<compile_context>
chip_gen: v7x
topology: tpu7x:2x2x1
jax: 0.10.0
libtpu: 0.0.40
codegen_flags: <defaults>
</compile_context>

<pallas_src>
import jax
import jax.numpy as jnp
from jax.experimental import pallas as pl
from jax.experimental.pallas import tpu as pltpu

BN_EPS = 1e-5
LANE = 128


# ---------------------------------------------------------------------------
# Kernel: G graphs per grid step.
# ---------------------------------------------------------------------------
def _mpnn_encoder_kernel(
    a_ref, x_ref,
    w1_ref, w2f1_ref, wf1x_ref, wf1h2_ref, wf2_ref, vec_ref,
    out_ref,
):
    f32, bf16 = jnp.float32, jnp.bfloat16
    G, N, F = x_ref.shape
    Hp = w1_ref.shape[1]
    NOUTp = wf2_ref.shape[1]
    GN = G * N

    a = a_ref[...]                                 # (G, N, N) bf16 normalized adjacency
    xf = x_ref[...].reshape(GN, F)                 # stack graphs -> fill MXU sublane rows

    # Packed per-channel vector table (rows: b1, s1, t1, b2, s2, t2, bf1, bf2).
    b1 = vec_ref[0:1, :Hp]
    s1 = vec_ref[1:2, :Hp]
    t1 = vec_ref[2:3, :Hp]
    b2 = vec_ref[3:4, :Hp]
    s2 = vec_ref[4:5, :Hp]
    t2 = vec_ref[5:6, :Hp]
    bf1 = vec_ref[6:7, :Hp]
    bf2 = vec_ref[7:8, :NOUTp]

    # --- GCN layer 1: A @ (X @ W1) + b1, ReLU, folded eval-BatchNorm ---
    xw = jnp.dot(xf, w1_ref[...], preferred_element_type=f32)               # (GN, Hp)
    pre1 = jnp.einsum(
        "gij,gjh->gih", a, xw.astype(bf16).reshape(G, N, Hp),
        preferred_element_type=f32,
    ).reshape(GN, Hp) + b1
    h1 = jnp.maximum(pre1, 0.0) * s1 + t1                                    # f32 (GN, Hp)
    h1b = h1.astype(bf16)
    # dropout -> identity (eval)

    # --- shared-LHS pack: h1 @ [W2 | Wf1h1] in one 256-lane MXU pass ---
    hpk = jnp.dot(h1b, w2f1_ref[...], preferred_element_type=f32)            # (GN, 2*Hp)
    hw = hpk[:, :Hp]          # h1 @ W2        (lane-boundary-aligned split)
    z_h1 = hpk[:, Hp:]        # h1 @ Wf1h1

    # --- GCN layer 2: A @ (h1 @ W2) + b2, ReLU, folded eval-BatchNorm ---
    pre2 = jnp.einsum(
        "gij,gjh->gih", a, hw.astype(bf16).reshape(G, N, Hp),
        preferred_element_type=f32,
    ).reshape(GN, Hp) + b2
    h2 = jnp.maximum(pre2, 0.0) * s2 + t2
    h2b = h2.astype(bf16)

    # --- fc1 on concat([x, h1, h2], dim=1): split matmuls (h1 branch already done) ---
    z = (jnp.dot(xf, wf1x_ref[...], preferred_element_type=f32)
         + z_h1
         + jnp.dot(h2b, wf1h2_ref[...], preferred_element_type=f32)
         + bf1)
    z = jnp.maximum(z, 0.0)

    # --- fc2 + ReLU; bf16 lane-dense writeback (wrapper slices to nout) ---
    o = jnp.dot(z.astype(bf16), wf2_ref[...], preferred_element_type=f32) + bf2
    out_ref[...] = jnp.maximum(o, 0.0).reshape(G, N, NOUTp).astype(out_ref.dtype)


# ---------------------------------------------------------------------------
# Host-side glue.
# ---------------------------------------------------------------------------
def gcn_normalize_dense(edge_index, edge_weight, num_nodes, out_dtype=jnp.float32):
    """Densify sparse adjacency + symmetric GCN normalization (matches GCNConv).

    The dtype cast is folded into the final elementwise so no dense f32 copy of the
    (N, N) adjacency needs to round-trip HBM when bf16 is requested.
    """
    row, col = edge_index[0], edge_index[1]
    A = jnp.zeros((num_nodes, num_nodes), jnp.float32).at[col, row].add(edge_weight)
    A = A + jnp.eye(num_nodes, dtype=jnp.float32)          # self loops
    deg = A.sum(axis=1)
    dinv = jnp.where(deg > 0, jax.lax.rsqrt(deg), 0.0)
    return (dinv[:, None] * A * dinv[None, :]).astype(out_dtype)


def _pad_to(arr, shape):
    pads = [(0, t - s) for s, t in zip(arr.shape, shape)]
    return jnp.pad(arr, pads)


def _fold_bn(g, beta, rm, rv):
    scale = g * jax.lax.rsqrt(rv + BN_EPS)
    shift = beta - rm * scale
    return scale, shift


def _round_up(v, m):
    return ((v + m - 1) // m) * m


def prepare_params(params, nfeat, nhid, nout, hp=LANE, noutp=LANE):
    """Fold eval BatchNorm, split fc1, pack W2||Wf1h1 and per-channel vectors, pad to 128 lanes."""
    F, H = nfeat, nhid
    assert hp == noutp, "packed per-channel vector table assumes one lane width"
    s1, t1 = _fold_bn(params["g1"], params["beta1"], params["rm1"], params["rv1"])
    s2, t2 = _fold_bn(params["g2"], params["beta2"], params["rm2"], params["rv2"])
    wf1 = params["wf1"]                              # (F + 2H, H)
    wf1x, wf1h1, wf1h2 = wf1[:F], wf1[F:F + H], wf1[F + H:]

    def w(a, rows, cols):    # matmul weight: pad with zeros + bf16 (MXU operand)
        return _pad_to(a.astype(jnp.float32), (rows, cols)).astype(jnp.bfloat16)

    def v(a, cols):          # 1-D per-channel vector -> zero-padded f32 row
        return _pad_to(a.astype(jnp.float32), (cols,))

    # NOTE(padding invariant): every per-channel vector (biases and folded-BN scale/shift)
    # is ZERO-padded past the real channel count, so padded hidden/output lanes satisfy
    # relu(0)*0 + 0 == 0 and stay exactly zero all the way through fc1/fc2.
    vecs = jnp.stack([
        v(params["b1"], hp), v(s1, hp), v(t1, hp),
        v(params["b2"], hp), v(s2, hp), v(t2, hp),
        v(params["bf1"], hp), v(params["bf2"], noutp),
    ], axis=0)                                       # (8, 128) f32

    # Shared-LHS pack: [W2 | Wf1h1] -> (hp, 2*hp) bf16, one 256-wide RHS for the h1 matmul.
    w2f1 = jnp.concatenate([w(params["w2"], hp, hp), w(wf1h1, hp, hp)], axis=1)

    return dict(
        w1=w(params["w1"], F, hp),
        w2f1=w2f1,
        wf1x=w(wf1x, F, hp),
        wf1h2=w(wf1h2, hp, hp),
        wf2=w(params["wf2"], hp, noutp),
        vecs=vecs,
    )


_WEIGHT_ORDER = ["w1", "w2f1", "wf1x", "wf1h2", "wf2", "vecs"]


def _pick_graphs_per_step(B, N, target_rows=128):
    """Batch enough graphs per step to present ~128 LHS rows to the MXU, but keep the
    grid length >= 2 so v7x can shard steps across its two TensorCores."""
    g = max(1, target_rows // max(N, 1))
    g = min(g, B)
    if B >= 2:
        g = min(g, max(1, B // 2))
    return max(g, 1)


def mpnn_encoder_forward(edge_index, edge_weight, x, params, graphs_per_step=None):
    """Batched forward. edge_index: (2, E) shared topology, edge_weight: (B, E), x: (B, N, F)."""
    B, N, F = x.shape
    H = params["w1"].shape[1]
    NOUT = params["wf2"].shape[1]
    Hp = max(LANE, _round_up(H, LANE))
    NOUTp = max(Hp, _round_up(NOUT, LANE))
    Hp = NOUTp  # single lane width for the packed vector table

    # bf16 A produced directly (cast folded into the normalization elementwise).
    # NOTE: bf16 A loses a little precision in the 1/sqrt(deg) scaling; error grows with
    # node degree. Covered by the verification tolerance here.
    a_norm = jax.vmap(
        lambda w: gcn_normalize_dense(edge_index, w, N, jnp.bfloat16))(edge_weight)
    xb = x.astype(jnp.bfloat16)

    G = graphs_per_step or _pick_graphs_per_step(B, N)
    Bp = pl.cdiv(B, G) * G
    if Bp != B:   # zero-pad the batch; padded graphs produce garbage rows we slice away
        a_norm = jnp.pad(a_norm, ((0, Bp - B), (0, 0), (0, 0)))
        xb = jnp.pad(xb, ((0, Bp - B), (0, 0), (0, 0)))
    n_steps = Bp // G

    p = prepare_params(params, F, H, NOUT, Hp, NOUTp)
    weights = [p[k] for k in _WEIGHT_ORDER]

    def batched_spec(d1, d2):   # per-step operand: one (G, d1, d2) block per grid step
        return pl.BlockSpec((G, d1, d2), lambda b: (b, 0, 0))

    def shared_spec(arr):       # shared weight: constant block index -> stays resident
        return pl.BlockSpec(arr.shape, lambda b: (0, 0))

    flops_per_graph = 2 * N * (
        F * Hp              # X @ W1
        + N * Hp            # A @ (X W1)
        + Hp * (2 * Hp)     # h1 @ [W2 | Wf1h1]
        + N * Hp            # A @ (h1 W2)
        + F * Hp            # x @ Wf1x
        + Hp * Hp           # h2 @ Wf1h2
        + Hp * NOUTp        # fc2
    )
    weight_bytes = sum(int(w.nbytes) for w in weights)
    bytes_accessed = int(a_norm.nbytes) + int(xb.nbytes) + weight_bytes + Bp * N * NOUTp * 2

    # --- VMEM scaling plan -------------------------------------------------
    # Double-buffered per-step blocks + resident weights + live f32 intermediates.
    blk_bytes = G * N * (N + F + NOUTp) * 2          # bf16 a/x/out blocks
    act_bytes = 8 * G * N * Hp * 4                    # rough live f32 activations
    vmem_estimate = 2 * blk_bytes + 2 * weight_bytes + act_bytes
    compiler_kwargs = dict(dimension_semantics=("parallel",))
    if vmem_estimate > (30 << 20):
        # Cap at 64 MiB = v7x physical VMEM (v5e/v6e have 128 MiB, so this is safe everywhere).
        compiler_kwargs["vmem_limit_bytes"] = int(min(64 << 20, int(1.5 * vmem_estimate)))
        # TODO(synk): for N past a few thousand nodes, additionally tile A over node-row
        # blocks (pl.when-initialized accumulator) instead of staging the full (N, N) block.

    out = pl.pallas_call(
        _mpnn_encoder_kernel,
        out_shape=jax.ShapeDtypeStruct((Bp, N, NOUTp), jnp.bfloat16),
        grid=(n_steps,),
        in_specs=[batched_spec(N, N), batched_spec(N, F)] + [shared_spec(w) for w in weights],
        out_specs=batched_spec(N, NOUTp),
        compiler_params=pltpu.CompilerParams(**compiler_kwargs),
        cost_estimate=pl.CostEstimate(
            flops=Bp * flops_per_graph, transcendentals=0, bytes_accessed=bytes_accessed),
    )(a_norm, xb, *weights)

    return out[:B, :, :NOUT].astype(jnp.float32)


# ---------------------------------------------------------------------------
# References for verification.
# ---------------------------------------------------------------------------
def reference_forward_f32(edge_index, edge_weight, x, params):
    """Plain-JAX f32 reference with the original module math (eval mode)."""
    def one(w, xg):
        a = gcn_normalize_dense(edge_index, w, xg.shape[0])

        def bn(h, g, b, rm, rv):
            return (h - rm) / jnp.sqrt(rv + BN_EPS) * g + b

        h1 = jnp.maximum(a @ (xg @ params["w1"]) + params["b1"], 0.0)
        h1 = bn(h1, params["g1"], params["beta1"], params["rm1"], params["rv1"])
        h2 = jnp.maximum(a @ (h1 @ params["w2"]) + params["b2"], 0.0)
        h2 = bn(h2, params["g2"], params["beta2"], params["rm2"], params["rv2"])
        cat = jnp.concatenate([xg, h1, h2], axis=1)
        z = jnp.maximum(cat @ params["wf1"] + params["bf1"], 0.0)
        return jnp.maximum(z @ params["wf2"] + params["bf2"], 0.0)

    return jax.vmap(one)(edge_weight, x)


def reference_forward_matched(a_norm_bf16, x_bf16, p, nout):
    """Plain-JAX reference with the *same* bf16-at-MXU / folded-BN / packed-weight math."""
    f32, bf16 = jnp.float32, jnp.bfloat16
    Hp = p["w1"].shape[1]
    NOUTp = p["wf2"].shape[1]
    vec = p["vecs"]
    b1, s1, t1 = vec[0:1, :Hp], vec[1:2, :Hp], vec[2:3, :Hp]
    b2, s2, t2 = vec[3:4, :Hp], vec[4:5, :Hp], vec[5:6, :Hp]
    bf1, bf2 = vec[6:7, :Hp], vec[7:8, :NOUTp]

    def one(a, x):
        xw = jnp.dot(x, p["w1"], preferred_element_type=f32)
        pre1 = jnp.dot(a, xw.astype(bf16), preferred_element_type=f32) + b1
        h1 = jnp.maximum(pre1, 0.0) * s1 + t1
        h1b = h1.astype(bf16)
        hpk = jnp.dot(h1b, p["w2f1"], preferred_element_type=f32)
        hw, z_h1 = hpk[:, :Hp], hpk[:, Hp:]
        pre2 = jnp.dot(a, hw.astype(bf16), preferred_element_type=f32) + b2
        h2 = jnp.maximum(pre2, 0.0) * s2 + t2
        h2b = h2.astype(bf16)
        z = (jnp.dot(x, p["wf1x"], preferred_element_type=f32)
             + z_h1
             + jnp.dot(h2b, p["wf1h2"], preferred_element_type=f32)
             + bf1)
        z = jnp.maximum(z, 0.0)
        o = jnp.dot(z.astype(bf16), p["wf2"], preferred_element_type=f32) + bf2
        return jnp.maximum(o, 0.0).astype(bf16)

    out = jax.vmap(one)(a_norm_bf16, x_bf16)
    return out[:, :, :nout].astype(jnp.float32)


if __name__ == "__main__":
    # Small shapes: B=16 graphs (G=8 per step -> grid of 2), N=16 nodes,
    # nfeat=8, nhid=32, nout=16.
    B, N, F, H, NOUT = 16, 16, 8, 32, 16

    key = jax.random.PRNGKey(0)
    keys = jax.random.split(key, 16)

    # Ring graph topology (both directions), per-graph positive edge weights.
    src = jnp.arange(N, dtype=jnp.int32)
    dst = (src + 1) % N
    edge_index = jnp.stack(
        [jnp.concatenate([src, dst]), jnp.concatenate([dst, src])], axis=0
    )  # (2, 2N)
    edge_weight = jax.random.uniform(keys[0], (B, 2 * N), jnp.float32, 0.5, 1.5)
    x = jax.random.normal(keys[1], (B, N, F), jnp.float32)

    params = {
        "w1": 0.2 * jax.random.normal(keys[2], (F, H), jnp.float32),
        "b1": 0.1 * jax.random.normal(keys[3], (H,), jnp.float32),
        "g1": 1.0 + 0.1 * jax.random.normal(keys[4], (H,), jnp.float32),
        "beta1": 0.1 * jax.random.normal(keys[5], (H,), jnp.float32),
        "rm1": 0.05 * jax.random.normal(keys[6], (H,), jnp.float32),
        "rv1": 1.0 + 0.1 * jax.random.uniform(keys[7], (H,), jnp.float32),
        "w2": 0.2 * jax.random.normal(keys[8], (H, H), jnp.float32),
        "b2": 0.1 * jax.random.normal(keys[9], (H,), jnp.float32),
        "g2": 1.0 + 0.1 * jax.random.normal(keys[10], (H,), jnp.float32),
        "beta2": 0.1 * jax.random.normal(keys[11], (H,), jnp.float32),
        "rm2": 0.05 * jax.random.normal(keys[12], (H,), jnp.float32),
        "rv2": 1.0 + 0.1 * jax.random.uniform(keys[13], (H,), jnp.float32),
        "wf1": 0.2 * jax.random.normal(keys[14], (F + 2 * H, H), jnp.float32),
        "bf1": jnp.zeros((H,), jnp.float32),
        "wf2": 0.2 * jax.random.normal(keys[15], (H, NOUT), jnp.float32),
        "bf2": jnp.zeros((NOUT,), jnp.float32),
    }

    out = jax.block_until_ready(mpnn_encoder_forward(edge_index, edge_weight, x, params))
    assert out.shape == (B, N, NOUT)

    # Tight check: kernel vs. a JAX reference using identical bf16/folded-BN/packed-weight math.
    a_norm = jax.vmap(
        lambda w: gcn_normalize_dense(edge_index, w, N, jnp.bfloat16))(edge_weight)
    p = prepare_params(params, F, H, NOUT)
    ref_matched = reference_forward_matched(a_norm, x.astype(jnp.bfloat16), p, NOUT)
    assert jnp.allclose(out, ref_matched, atol=1e-2, rtol=1e-2), \
        "Pallas kernel mismatch vs matched-precision JAX reference"

    # Loose check: vs. pure-f32 module semantics (tolerance budget for bf16 MXU operands).
    ref_f32 = reference_forward_f32(edge_index, edge_weight, x, params)
    assert jnp.allclose(out, ref_f32, atol=5e-2, rtol=5e-2), \
        "Pallas kernel mismatch vs f32 JAX reference"

    print("KERNEL_OK")
</pallas_src>

<mosaic_0001>
module attributes {stable_mosaic.version = 11 : i64} {
  func.func @_mpnn_encoder_kernel(%arg0: i32, %arg1: memref<8x16x16xbf16, #tpu.memory_space<vmem>>, %arg2: memref<8x16x8xbf16, #tpu.memory_space<vmem>>, %arg3: memref<8x128xbf16, #tpu.memory_space<vmem>>, %arg4: memref<128x256xbf16, #tpu.memory_space<vmem>>, %arg5: memref<8x128xbf16, #tpu.memory_space<vmem>>, %arg6: memref<128x128xbf16, #tpu.memory_space<vmem>>, %arg7: memref<128x128xbf16, #tpu.memory_space<vmem>>, %arg8: memref<8x128xf32, #tpu.memory_space<vmem>>, %arg9: memref<8x16x128xbf16, #tpu.memory_space<vmem>>) attributes {dimension_semantics = [#tpu.dimension_semantics<parallel>], iteration_bounds = array<i64: 2>, scalar_prefetch = 0 : i64, scratch_operands = 0 : i64, tpu.core_type = #tpu.core_type<tc>, window_params = [{transform_indices = @transform_0, window_bounds = array<i64: 8, 16, 16>}, {transform_indices = @transform_1, window_bounds = array<i64: 8, 16, 8>}, {pipeline_mode = #tpu.pipeline_mode<synchronous>, transform_indices = @transform_2, window_bounds = array<i64: 8, 128>}, {pipeline_mode = #tpu.pipeline_mode<synchronous>, transform_indices = @transform_3, window_bounds = array<i64: 128, 256>}, {pipeline_mode = #tpu.pipeline_mode<synchronous>, transform_indices = @transform_4, window_bounds = array<i64: 8, 128>}, {pipeline_mode = #tpu.pipeline_mode<synchronous>, transform_indices = @transform_5, window_bounds = array<i64: 128, 128>}, {pipeline_mode = #tpu.pipeline_mode<synchronous>, transform_indices = @transform_6, window_bounds = array<i64: 128, 128>}, {pipeline_mode = #tpu.pipeline_mode<synchronous>, transform_indices = @transform_7, window_bounds = array<i64: 8, 128>}, {transform_indices = @transform_8, window_bounds = array<i64: 8, 16, 128>}]} {
    %c0 = arith.constant 0 : index
    %c0_0 = arith.constant 0 : index
    %c0_1 = arith.constant 0 : index
    %0 = vector.load %arg1[%c0, %c0_0, %c0_1] : memref<8x16x16xbf16, #tpu.memory_space<vmem>>, vector<8x16x16xbf16>
    %c0_2 = arith.constant 0 : index
    %c0_3 = arith.constant 0 : index
    %c0_4 = arith.constant 0 : index
    %1 = vector.load %arg2[%c0_2, %c0_3, %c0_4] : memref<8x16x8xbf16, #tpu.memory_space<vmem>>, vector<8x16x8xbf16>
    %2 = vector.shape_cast %1 : vector<8x16x8xbf16> to vector<128x8xbf16>
    %c0_5 = arith.constant 0 : index
    %c0_6 = arith.constant 0 : index
    %3 = vector.load %arg8[%c0_5, %c0_6] : memref<8x128xf32, #tpu.memory_space<vmem>>, vector<1x128xf32>
    %c1 = arith.constant 1 : index
    %c0_7 = arith.constant 0 : index
    %4 = vector.load %arg8[%c1, %c0_7] : memref<8x128xf32, #tpu.memory_space<vmem>>, vector<1x128xf32>
    %c2 = arith.constant 2 : index
    %c0_8 = arith.constant 0 : index
    %5 = vector.load %arg8[%c2, %c0_8] : memref<8x128xf32, #tpu.memory_space<vmem>>, vector<1x128xf32>
    %c3 = arith.constant 3 : index
    %c0_9 = arith.constant 0 : index
    %6 = vector.load %arg8[%c3, %c0_9] : memref<8x128xf32, #tpu.memory_space<vmem>>, vector<1x128xf32>
    %c4 = arith.constant 4 : index
    %c0_10 = arith.constant 0 : index
    %7 = vector.load %arg8[%c4, %c0_10] : memref<8x128xf32, #tpu.memory_space<vmem>>, vector<1x128xf32>
    %c5 = arith.constant 5 : index
    %c0_11 = arith.constant 0 : index
    %8 = vector.load %arg8[%c5, %c0_11] : memref<8x128xf32, #tpu.memory_space<vmem>>, vector<1x128xf32>
    %c6 = arith.constant 6 : index
    %c0_12 = arith.constant 0 : index
    %9 = vector.load %arg8[%c6, %c0_12] : memref<8x128xf32, #tpu.memory_space<vmem>>, vector<1x128xf32>
    %c7 = arith.constant 7 : index
    %c0_13 = arith.constant 0 : index
    %10 = vector.load %arg8[%c7, %c0_13] : memref<8x128xf32, #tpu.memory_space<vmem>>, vector<1x128xf32>
    %c0_14 = arith.constant 0 : index
    %c0_15 = arith.constant 0 : index
    %11 = vector.load %arg3[%c0_14, %c0_15] : memref<8x128xbf16, #tpu.memory_space<vmem>>, vector<8x128xbf16>
    %cst = arith.constant dense<0.000000e+00> : vector<128x128xf32>
    %12 = tpu.matmul %2, %11, %cst {dimension_numbers = #tpu.dot_dimension_numbers<[1], [0], [0], [1], [0, 0, 1, 1], [], []>} : vector<128x8xbf16>, vector<8x128xbf16>, vector<128x128xf32> -> vector<128x128xf32>
    %13 = arith.truncf %12 : vector<128x128xf32> to vector<128x128xbf16>
    %14 = vector.shape_cast %13 : vector<128x128xbf16> to vector<8x16x128xbf16>
    "tpu.trace_start"() <{level = 10 : i32, message = "gij,gjh->gih"}> : () -> ()
    %cst_16 = arith.constant dense<0.000000e+00> : vector<8x16x128xf32>
    %15 = tpu.matmul %0, %14, %cst_16 {dimension_numbers = #tpu.dot_dimension_numbers<[2], [1], [1], [2], [0, 0, 0, 1, 1, 2], [0], [0]>} : vector<8x16x16xbf16>, vector<8x16x128xbf16>, vector<8x16x128xf32> -> vector<8x16x128xf32>
    "tpu.trace_stop"() : () -> ()
    %16 = vector.shape_cast %15 : vector<8x16x128xf32> to vector<128x128xf32>
    %17 = vector.broadcast %3 : vector<1x128xf32> to vector<128x128xf32>
    %18 = arith.addf %16, %17 : vector<128x128xf32>
    %cst_17 = arith.constant 0.000000e+00 : f32
    %19 = vector.broadcast %cst_17 : f32 to vector<128x128xf32>
    %20 = arith.maximumf %18, %19 : vector<128x128xf32>
    %21 = vector.broadcast %4 : vector<1x128xf32> to vector<128x128xf32>
    %22 = arith.mulf %20, %21 : vector<128x128xf32>
    %23 = vector.broadcast %5 : vector<1x128xf32> to vector<128x128xf32>
    %24 = arith.addf %22, %23 : vector<128x128xf32>
    %25 = arith.truncf %24 : vector<128x128xf32> to vector<128x128xbf16>
    %c0_18 = arith.constant 0 : index
    %c0_19 = arith.constant 0 : index
    %26 = vector.load %arg4[%c0_18, %c0_19] : memref<128x256xbf16, #tpu.memory_space<vmem>>, vector<128x256xbf16>
    %cst_20 = arith.constant dense<0.000000e+00> : vector<128x256xf32>
    %27 = tpu.matmul %25, %26, %cst_20 {dimension_numbers = #tpu.dot_dimension_numbers<[1], [0], [0], [1], [0, 0, 1, 1], [], []>} : vector<128x128xbf16>, vector<128x256xbf16>, vector<128x256xf32> -> vector<128x256xf32>
    %28 = vector.extract_strided_slice %27 {offsets = [0, 0], sizes = [128, 128], strides = [1, 1]} : vector<128x256xf32> to vector<128x128xf32>
    %29 = vector.extract_strided_slice %27 {offsets = [0, 128], sizes = [128, 128], strides = [1, 1]} : vector<128x256xf32> to vector<128x128xf32>
    %30 = arith.truncf %28 : vector<128x128xf32> to vector<128x128xbf16>
    %31 = vector.shape_cast %30 : vector<128x128xbf16> to vector<8x16x128xbf16>
    "tpu.trace_start"() <{level = 10 : i32, message = "gij,gjh->gih"}> : () -> ()
    %cst_21 = arith.constant dense<0.000000e+00> : vector<8x16x128xf32>
    %32 = tpu.matmul %0, %31, %cst_21 {dimension_numbers = #tpu.dot_dimension_numbers<[2], [1], [1], [2], [0, 0, 0, 1, 1, 2], [0], [0]>} : vector<8x16x16xbf16>, vector<8x16x128xbf16>, vector<8x16x128xf32> -> vector<8x16x128xf32>
    "tpu.trace_stop"() : () -> ()
    %33 = vector.shape_cast %32 : vector<8x16x128xf32> to vector<128x128xf32>
    %34 = vector.broadcast %6 : vector<1x128xf32> to vector<128x128xf32>
    %35 = arith.addf %33, %34 : vector<128x128xf32>
    %cst_22 = arith.constant 0.000000e+00 : f32
    %36 = vector.broadcast %cst_22 : f32 to vector<128x128xf32>
    %37 = arith.maximumf %35, %36 : vector<128x128xf32>
    %38 = vector.broadcast %7 : vector<1x128xf32> to vector<128x128xf32>
    %39 = arith.mulf %37, %38 : vector<128x128xf32>
    %40 = vector.broadcast %8 : vector<1x128xf32> to vector<128x128xf32>
    %41 = arith.addf %39, %40 : vector<128x128xf32>
    %42 = arith.truncf %41 : vector<128x128xf32> to vector<128x128xbf16>
    %c0_23 = arith.constant 0 : index
    %c0_24 = arith.constant 0 : index
    %43 = vector.load %arg5[%c0_23, %c0_24] : memref<8x128xbf16, #tpu.memory_space<vmem>>, vector<8x128xbf16>
    %cst_25 = arith.constant dense<0.000000e+00> : vector<128x128xf32>
    %44 = tpu.matmul %2, %43, %cst_25 {dimension_numbers = #tpu.dot_dimension_numbers<[1], [0], [0], [1], [0, 0, 1, 1], [], []>} : vector<128x8xbf16>, vector<8x128xbf16>, vector<128x128xf32> -> vector<128x128xf32>
    %45 = arith.addf %44, %29 : vector<128x128xf32>
    %c0_26 = arith.constant 0 : index
    %c0_27 = arith.constant 0 : index
    %46 = vector.load %arg6[%c0_26, %c0_27] : memref<128x128xbf16, #tpu.memory_space<vmem>>, vector<128x128xbf16>
    %cst_28 = arith.constant dense<0.000000e+00> : vector<128x128xf32>
    %47 = tpu.matmul %42, %46, %cst_28 {dimension_numbers = #tpu.dot_dimension_numbers<[1], [0], [0], [1], [0, 0, 1, 1], [], []>} : vector<128x128xbf16>, vector<128x128xbf16>, vector<128x128xf32> -> vector<128x128xf32>
    %48 = arith.addf %45, %47 : vector<128x128xf32>
    %49 = vector.broadcast %9 : vector<1x128xf32> to vector<128x128xf32>
    %50 = arith.addf %48, %49 : vector<128x128xf32>
    %cst_29 = arith.constant 0.000000e+00 : f32
    %51 = vector.broadcast %cst_29 : f32 to vector<128x128xf32>
    %52 = arith.maximumf %50, %51 : vector<128x128xf32>
    %53 = arith.truncf %52 : vector<128x128xf32> to vector<128x128xbf16>
    %c0_30 = arith.constant 0 : index
    %c0_31 = arith.constant 0 : index
    %54 = vector.load %arg7[%c0_30, %c0_31] : memref<128x128xbf16, #tpu.memory_space<vmem>>, vector<128x128xbf16>
    %cst_32 = arith.constant dense<0.000000e+00> : vector<128x128xf32>
    %55 = tpu.matmul %53, %54, %cst_32 {dimension_numbers = #tpu.dot_dimension_numbers<[1], [0], [0], [1], [0, 0, 1, 1], [], []>} : vector<128x128xbf16>, vector<128x128xbf16>, vector<128x128xf32> -> vector<128x128xf32>
    %56 = vector.broadcast %10 : vector<1x128xf32> to vector<128x128xf32>
    %57 = arith.addf %55, %56 : vector<128x128xf32>
    %cst_33 = arith.constant 0.000000e+00 : f32
    %58 = vector.broadcast %cst_33 : f32 to vector<128x128xf32>
    %59 = arith.maximumf %57, %58 : vector<128x128xf32>
    %60 = vector.shape_cast %59 : vector<128x128xf32> to vector<8x16x128xf32>
    %61 = arith.truncf %60 : vector<8x16x128xf32> to vector<8x16x128xbf16>
    %c0_34 = arith.constant 0 : index
    %c0_35 = arith.constant 0 : index
    %c0_36 = arith.constant 0 : index
    %62 = vector.load %arg9[%c0_34, %c0_35, %c0_36] : memref<8x16x128xbf16, #tpu.memory_space<vmem>>, vector<8x16x128xbf16>
    tpu.vector_store %arg9[%c0_34, %c0_35, %c0_36], %61 {strides = array<i32>} : memref<8x16x128xbf16, #tpu.memory_space<vmem>>, vector<8x16x128xbf16>,
    return
  }
  func.func @transform_0(%arg0: i32) -> (i32, i32, i32) {
    %c0_i32 = arith.constant 0 : i32
    %c0_i32_0 = arith.constant 0 : i32
    %c0_i32_1 = arith.constant 0 : i32
    return %arg0, %c0_i32, %c0_i32_0 : i32, i32, i32
  }
  func.func @transform_1(%arg0: i32) -> (i32, i32, i32) {
    %c0_i32 = arith.constant 0 : i32
    %c0_i32_0 = arith.constant 0 : i32
    %c0_i32_1 = arith.constant 0 : i32
    return %arg0, %c0_i32, %c0_i32_0 : i32, i32, i32
  }
  func.func @transform_2(%arg0: i32) -> (i32, i32) {
    %c0_i32 = arith.constant 0 : i32
    %c0_i32_0 = arith.constant 0 : i32
    %c0_i32_1 = arith.constant 0 : i32
    return %c0_i32, %c0_i32_0 : i32, i32
  }
  func.func @transform_3(%arg0: i32) -> (i32, i32) {
    %c0_i32 = arith.constant 0 : i32
    %c0_i32_0 = arith.constant 0 : i32
    %c0_i32_1 = arith.constant 0 : i32
    return %c0_i32, %c0_i32_0 : i32, i32
  }
  func.func @transform_4(%arg0: i32) -> (i32, i32) {
    %c0_i32 = arith.constant 0 : i32
    %c0_i32_0 = arith.constant 0 : i32
    %c0_i32_1 = arith.constant 0 : i32
    return %c0_i32, %c0_i32_0 : i32, i32
  }
  func.func @transform_5(%arg0: i32) -> (i32, i32) {
    %c0_i32 = arith.constant 0 : i32
    %c0_i32_0 = arith.constant 0 : i32
    %c0_i32_1 = arith.constant 0 : i32
    return %c0_i32, %c0_i32_0 : i32, i32
  }
  func.func @transform_6(%arg0: i32) -> (i32, i32) {
    %c0_i32 = arith.constant 0 : i32
    %c0_i32_0 = arith.constant 0 : i32
    %c0_i32_1 = arith.constant 0 : i32
    return %c0_i32, %c0_i32_0 : i32, i32
  }
  func.func @transform_7(%arg0: i32) -> (i32, i32) {
    %c0_i32 = arith.constant 0 : i32
    %c0_i32_0 = arith.constant 0 : i32
    %c0_i32_1 = arith.constant 0 : i32
    return %c0_i32, %c0_i32_0 : i32, i32
  }
  func.func @transform_8(%arg0: i32) -> (i32, i32, i32) {
    %c0_i32 = arith.constant 0 : i32
    %c0_i32_0 = arith.constant 0 : i32
    %c0_i32_1 = arith.constant 0 : i32
    return %arg0, %c0_i32, %c0_i32_0 : i32, i32, i32
  }
}

</mosaic_0001>

<llo_original>
// kernel: tpu_custom_call.1
$region0: #{tpu_custom_call.1}
  #allocation0 [shape = 'u32[]', space=smem, size = 0x4, offset = 0x4, fixed_abs, tag = 'smem constant byte address 0x4 - core index']
  #allocation1 [shape = 'u32[144,128]{1,0:T(1,128)}', space=vmem, size = 0x12000, scoped, tag = 'internal scratch']
  %s0 = inlined_call_operand.vmem [shape: bf16[16,16,16], index: 0, kind: input, shape index: {}]
  %s1 = inlined_call_operand.vmem [shape: bf16[16,16,8], index: 1, kind: input, shape index: {}]
  %s2 = inlined_call_operand.hbm [shape: bf16[8,128], index: 2, kind: input, shape index: {}]
  %s3 = inlined_call_operand.hbm [shape: bf16[128,256], index: 3, kind: input, shape index: {}]
  %s4 = inlined_call_operand.vmem [shape: bf16[8,128], index: 4, kind: input, shape index: {}]
  %s5 = inlined_call_operand.vmem [shape: bf16[128,128], index: 5, kind: input, shape index: {}]
  %s6 = inlined_call_operand.hbm [shape: bf16[128,128], index: 6, kind: input, shape index: {}]
  %s7 = inlined_call_operand.vmem [shape: f32[8,128], index: 7, kind: input, shape index: {}]
  %s8 = inlined_call_operand.hbm [shape: bf16[16,16,128], index: 8, kind: output, shape index: {}]
  %s9 = sld [smem:[#allocation0]]
  $region77: #{tpu_custom_call.1} parent=0
    _
  %s11 = ssub.s32 1, %s9
  %s12 = scalar_select 0, %s11, %s9
  $region1: #{tpu_custom_call.1} parent=0
    #allocation2 [shape = 'u8[2048]{0}', space=vmem, size = 0x800, scoped, tag = 'input window, operand 2, single buffered']
    #allocation3 [shape = 's32[2]{0}', space=sflag, size = 0x8, scoped, tag = 'scoped memory for tpu_custom_call.1']
    #allocation4 [shape = 's32[2]{0}', space=sflag, size = 0x8, scoped, tag = 'scoped memory for tpu_custom_call.1']
    #allocation5 [shape = 'u8[65536]{0}', space=vmem, size = 0x10000, scoped, tag = 'input window, operand 3, single buffered']
    #allocation6 [shape = 's32[1]{0}', space=sflag, size = 0x4, scoped, tag = 'scoped memory for tpu_custom_call.1']
    #allocation7 [shape = 'u8[32768]{0}', space=vmem, size = 0x8000, scoped, tag = 'input window, operand 6, single buffered']
    #allocation8 [shape = 'u8[65536]{0}', space=vmem, size = 0x10000, scoped, tag = 'output window, operand 0']
    %13 = vsyncpa [#allocation3], 0
    %14 = vsyncpa [#allocation6], 0
    %15 = vsyncpa [#allocation4], 0
    %s16 = scalar_lea.sflag [#allocation4], 1
    %17 = vsyncpa %s16, 0
    loop: start=0, step=1, limit=4
    $region2: #{tpu_custom_call.1} parent=1 // loop_pre_header
      _
    $region3: #{tpu_custom_call.1} parent=1 // loop_header
      %s19 = sphi 0, %s23
      %p20 = scmp.ge.s32.totalorder %s19, 4
      %s29 = sphi 0, %s31
      %s32 = sphi 0, %s29
      %s33 = sphi 0, %s32
      %s49 = sphi 0, %s33
      %s55 = sphi 0, %s57
      %s58 = sphi 0, %s55
      %s59 = sphi 0, %s58
      %s75 = sphi 0, %s59
      %s79 = sphi 0, %s79
      %s81 = sphi 0, %s79
      %s82 = sphi 0, %s81
      %s96 = sphi 0, %s82
      %s100 = sphi 0, %s100
      %s102 = sphi 0, %s100
      %s103 = sphi 0, %s102
      %s117 = sphi 0, %s103
      %s121 = sphi 0, %s121
      %s123 = sphi 0, %s121
      %s124 = sphi 0, %s123
      %s138 = sphi 0, %s124
      %s142 = sphi 0, %s142
      %s144 = sphi 0, %s142
      %s145 = sphi 0, %s144
      %s159 = sphi 0, %s145
      %s163 = sphi 0, %s163
      %s165 = sphi 0, %s163
      %s166 = sphi 0, %s165
      %s180 = sphi 0, %s166
      %s184 = sphi 0, %s184
      %s186 = sphi 0, %s184
      %s187 = sphi 0, %s186
      %s201 = sphi 0, %s187
      %s207 = sphi 0, %s209
      %s210 = sphi 0, %s207
      %s211 = sphi 0, %s210
      %s227 = sphi 0, %s211
    $region4: #{tpu_custom_call.1} parent=1 // loop_header_branch
      %22 = sbr.rel (%p20) target = $region8
    $region5: #{tpu_custom_call.1} parent=1 // loop_body
      %s24 = ssub.s32 %s19, 1
      %s25 = ssub.s32 %s19, 2
      %s26 = sadd.s32 %s19, 1
      %s27 = ssub.s32 %s19, %s26
      %p28 = scmp.eq.s32.totalorder %s27, 0
      %s30 = sadd.s32 %s29, 1
      %s31 = scalar_select %p28, %s29, %s30
      %p34 = pneg %p28
      %p35 = scmp.eq.s32.totalorder %s19, 1
      %p36 = por %p34, %p35
      %p37 = scmp.ne.s32.totalorder %s29, %s32
      %p38 = scmp.eq.s32.totalorder %s19, 0
      %p39 = por %p37, %p38
      %p40 = scmp.ne.s32.totalorder %s29, %s32
      %p41 = scmp.eq.s32.totalorder %s24, 1
      %p42 = por %p40, %p41
      %p43 = scmp.ne.s32.totalorder %s32, %s33
      %p44 = scmp.eq.s32.totalorder %s24, 0
      %p45 = por %p43, %p44
      %p46 = scmp.ne.s32.totalorder %s32, %s33
      %p47 = scmp.eq.s32.totalorder %s25, 1
      %p48 = por %p46, %p47
      %p50 = scmp.ne.s32.totalorder %s33, %s49
      %p51 = scmp.eq.s32.totalorder %s25, 0
      %p52 = por %p50, %p51
      %s53 = ssub.s32 %s19, %s26
      %p54 = scmp.eq.s32.totalorder %s53, 0
      %s56 = sadd.s32 %s55, 1
      %s57 = scalar_select %p54, %s55, %s56
      %p60 = pneg %p54
      %p61 = scmp.eq.s32.totalorder %s19, 1
      %p62 = por %p60, %p61
      %p63 = scmp.ne.s32.totalorder %s55, %s58
      %p64 = scmp.eq.s32.totalorder %s19, 0
      %p65 = por %p63, %p64
      %p66 = scmp.ne.s32.totalorder %s55, %s58
      %p67 = scmp.eq.s32.totalorder %s24, 1
      %p68 = por %p66, %p67
      %p69 = scmp.ne.s32.totalorder %s58, %s59
      %p70 = scmp.eq.s32.totalorder %s24, 0
      %p71 = por %p69, %p70
      %p72 = scmp.ne.s32.totalorder %s58, %s59
      %p73 = scmp.eq.s32.totalorder %s25, 1
      %p74 = por %p72, %p73
      %p76 = scmp.ne.s32.totalorder %s59, %s75
      %p77 = scmp.eq.s32.totalorder %s25, 0
      %p78 = por %p76, %p77
      %s80 = sadd.s32 %s79, 1
      %p83 = scmp.eq.s32.totalorder %s19, 1
      %p84 = scmp.ne.s32.totalorder %s79, %s81
      %p85 = scmp.eq.s32.totalorder %s19, 0
      %p86 = por %p84, %p85
      %p87 = scmp.ne.s32.totalorder %s79, %s81
      %p88 = scmp.eq.s32.totalorder %s24, 1
      %p89 = por %p87, %p88
      %p90 = scmp.ne.s32.totalorder %s81, %s82
      %p91 = scmp.eq.s32.totalorder %s24, 0
      %p92 = por %p90, %p91
      %p93 = scmp.ne.s32.totalorder %s81, %s82
      %p94 = scmp.eq.s32.totalorder %s25, 1
      %p95 = por %p93, %p94
      %p97 = scmp.ne.s32.totalorder %s82, %s96
      %p98 = scmp.eq.s32.totalorder %s25, 0
      %p99 = por %p97, %p98
      %s101 = sadd.s32 %s100, 1
      %p104 = scmp.eq.s32.totalorder %s19, 1
      %p105 = scmp.ne.s32.totalorder %s100, %s102
      %p106 = scmp.eq.s32.totalorder %s19, 0
      %p107 = por %p105, %p106
      %p108 = scmp.ne.s32.totalorder %s100, %s102
      %p109 = scmp.eq.s32.totalorder %s24, 1
      %p110 = por %p108, %p109
      %p111 = scmp.ne.s32.totalorder %s102, %s103
      %p112 = scmp.eq.s32.totalorder %s24, 0
      %p113 = por %p111, %p112
      %p114 = scmp.ne.s32.totalorder %s102, %s103
      %p115 = scmp.eq.s32.totalorder %s25, 1
      %p116 = por %p114, %p115
      %p118 = scmp.ne.s32.totalorder %s103, %s117
      %p119 = scmp.eq.s32.totalorder %s25, 0
      %p120 = por %p118, %p119
      %s122 = sadd.s32 %s121, 1
      %p125 = scmp.eq.s32.totalorder %s19, 1
      %p126 = scmp.ne.s32.totalorder %s121, %s123
      %p127 = scmp.eq.s32.totalorder %s19, 0
      %p128 = por %p126, %p127
      %p129 = scmp.ne.s32.totalorder %s121, %s123
      %p130 = scmp.eq.s32.totalorder %s24, 1
      %p131 = por %p129, %p130
      %p132 = scmp.ne.s32.totalorder %s123, %s124
      %p133 = scmp.eq.s32.totalorder %s24, 0
      %p134 = por %p132, %p133
      %p135 = scmp.ne.s32.totalorder %s123, %s124
      %p136 = scmp.eq.s32.totalorder %s25, 1
      %p137 = por %p135, %p136
      %p139 = scmp.ne.s32.totalorder %s124, %s138
      %p140 = scmp.eq.s32.totalorder %s25, 0
      %p141 = por %p139, %p140
      %s143 = sadd.s32 %s142, 1
      %p146 = scmp.eq.s32.totalorder %s19, 1
      %p147 = scmp.ne.s32.totalorder %s142, %s144
      %p148 = scmp.eq.s32.totalorder %s19, 0
      %p149 = por %p147, %p148
      %p150 = scmp.ne.s32.totalorder %s142, %s144
      %p151 = scmp.eq.s32.totalorder %s24, 1
      %p152 = por %p150, %p151
      %p153 = scmp.ne.s32.totalorder %s144, %s145
      %p154 = scmp.eq.s32.totalorder %s24, 0
      %p155 = por %p153, %p154
      %p156 = scmp.ne.s32.totalorder %s144, %s145
      %p157 = scmp.eq.s32.totalorder %s25, 1
      %p158 = por %p156, %p157
      %p160 = scmp.ne.s32.totalorder %s145, %s159
      %p161 = scmp.eq.s32.totalorder %s25, 0
      %p162 = por %p160, %p161
      %s164 = sadd.s32 %s163, 1
      %p167 = scmp.eq.s32.totalorder %s19, 1
      %p168 = scmp.ne.s32.totalorder %s163, %s165
      %p169 = scmp.eq.s32.totalorder %s19, 0
      %p170 = por %p168, %p169
      %p171 = scmp.ne.s32.totalorder %s163, %s165
      %p172 = scmp.eq.s32.totalorder %s24, 1
      %p173 = por %p171, %p172
      %p174 = scmp.ne.s32.totalorder %s165, %s166
      %p175 = scmp.eq.s32.totalorder %s24, 0
      %p176 = por %p174, %p175
      %p177 = scmp.ne.s32.totalorder %s165, %s166
      %p178 = scmp.eq.s32.totalorder %s25, 1
      %p179 = por %p177, %p178
      %p181 = scmp.ne.s32.totalorder %s166, %s180
      %p182 = scmp.eq.s32.totalorder %s25, 0
      %p183 = por %p181, %p182
      %s185 = sadd.s32 %s184, 1
      %p188 = scmp.eq.s32.totalorder %s19, 1
      %p189 = scmp.ne.s32.totalorder %s184, %s186
      %p190 = scmp.eq.s32.totalorder %s19, 0
      %p191 = por %p189, %p190
      %p192 = scmp.ne.s32.totalorder %s184, %s186
      %p193 = scmp.eq.s32.totalorder %s24, 1
      %p194 = por %p192, %p193
      %p195 = scmp.ne.s32.totalorder %s186, %s187
      %p196 = scmp.eq.s32.totalorder %s24, 0
      %p197 = por %p195, %p196
      %p198 = scmp.ne.s32.totalorder %s186, %s187
      %p199 = scmp.eq.s32.totalorder %s25, 1
      %p200 = por %p198, %p199
      %p202 = scmp.ne.s32.totalorder %s187, %s201
      %p203 = scmp.eq.s32.totalorder %s25, 0
      %p204 = por %p202, %p203
      %s205 = ssub.s32 %s19, %s26
      %p206 = scmp.eq.s32.totalorder %s205, 0
      %s208 = sadd.s32 %s207, 1
      %s209 = scalar_select %p206, %s207, %s208
      %p212 = pneg %p206
      %p213 = scmp.eq.s32.totalorder %s19, 1
      %p214 = por %p212, %p213
      %p215 = scmp.ne.s32.totalorder %s207, %s210
      %p216 = scmp.eq.s32.totalorder %s19, 0
      %p217 = por %p215, %p216
      %p218 = scmp.ne.s32.totalorder %s207, %s210
      %p219 = scmp.eq.s32.totalorder %s24, 1
      %p220 = por %p218, %p219
      %p221 = scmp.ne.s32.totalorder %s210, %s211
      %p222 = scmp.eq.s32.totalorder %s24, 0
      %p223 = por %p221, %p222
      %p224 = scmp.ne.s32.totalorder %s210, %s211
      %p225 = scmp.eq.s32.totalorder %s25, 1
      %p226 = por %p224, %p225
      %p228 = scmp.ne.s32.totalorder %s211, %s227
      %p229 = scmp.eq.s32.totalorder %s25, 0
      %p230 = por %p228, %p229
      %p231 = scmp.le.s32.totalorder 1, %s19
      %p232 = scmp.lt.s32.totalorder %s19, 3
      %p233 = pnand %p231, %p232
      %p234 = pneg %p233
      // Predicated region
      $region9: #{tpu_custom_call.1} parent=5 // pred_check
        _
      $region10: #{tpu_custom_call.1} parent=5 // pred_check_branch
        %236 = sbr.rel (%p233) target = $region12
      $region11: #{tpu_custom_call.1} parent=5 // pred_region
        %s237 = ssub.s32 %s19, 1
        // Predicated region
        $region13: #{tpu_custom_call.1} parent=11 // pred_check
          %p238 = pneg %p92
        $region14: #{tpu_custom_call.1} parent=11 // pred_check_branch
          %240 = sbr.rel (%p238) target = $region16
        $region15: #{tpu_custom_call.1} parent=11 // pred_region
          %s242 = ssub.s32 64, 64
          %243 = vsyncadd [#allocation3], %s242
          %s245 = sshll.u32 [#allocation2], 4
          %s246 = int_to_ptr.vmem [resolvable:$true] %s245
          %248 = dma.hbm_to_vmem [thread:$0]  %s2, 64, %s246, [#allocation3]
        $region16: #{tpu_custom_call.1} parent=11 // pred_fallthru
          _
        // Predicated region
        $region17: #{tpu_custom_call.1} parent=11 // pred_check
          %p249 = pneg %p113
        $region18: #{tpu_custom_call.1} parent=11 // pred_check_branch
          %251 = sbr.rel (%p249) target = $region20
        $region19: #{tpu_custom_call.1} parent=11 // pred_region
          %s253 = ssub.s32 2048, 2048
          %254 = vsyncadd [#allocation6], %s253
          %s255 = sshll.u32 [#allocation5], 4
          %s256 = int_to_ptr.vmem [resolvable:$true] %s255
          %261 = dma.hbm_to_vmem [thread:$0]  %s3, 2048, %s256, [#allocation6], 128, 128, 8
        $region20: #{tpu_custom_call.1} parent=11 // pred_fallthru
          _
        // Predicated region
        $region21: #{tpu_custom_call.1} parent=11 // pred_check
          %p262 = pneg %p134
        $region22: #{tpu_custom_call.1} parent=11 // pred_check_branch
          %264 = sbr.rel (%p262) target = $region24
        $region23: #{tpu_custom_call.1} parent=11 // pred_region
          _
        $region24: #{tpu_custom_call.1} parent=11 // pred_fallthru
          _
        // Predicated region
        $region25: #{tpu_custom_call.1} parent=11 // pred_check
          %p265 = pneg %p155
        $region26: #{tpu_custom_call.1} parent=11 // pred_check_branch
          %267 = sbr.rel (%p265) target = $region28
        $region27: #{tpu_custom_call.1} parent=11 // pred_region
          _
        $region28: #{tpu_custom_call.1} parent=11 // pred_fallthru
          _
        // Predicated region
        $region29: #{tpu_custom_call.1} parent=11 // pred_check
          %p268 = pneg %p176
        $region30: #{tpu_custom_call.1} parent=11 // pred_check_branch
          %270 = sbr.rel (%p268) target = $region32
        $region31: #{tpu_custom_call.1} parent=11 // pred_region
          %s272 = ssub.s32 1024, 1024
          %273 = vsyncadd [#allocation6], %s272
          %s274 = sshll.u32 [#allocation7], 4
          %s275 = int_to_ptr.vmem [resolvable:$true] %s274
          %280 = dma.hbm_to_vmem [thread:$0]  %s6, 1024, %s275, [#allocation6], 64, 64, 4
        $region32: #{tpu_custom_call.1} parent=11 // pred_fallthru
          _
        // Predicated region
        $region33: #{tpu_custom_call.1} parent=11 // pred_check
          %p281 = pneg %p197
        $region34: #{tpu_custom_call.1} parent=11 // pred_check_branch
          %283 = sbr.rel (%p281) target = $region36
        $region35: #{tpu_custom_call.1} parent=11 // pred_region
          _
        $region36: #{tpu_custom_call.1} parent=11 // pred_fallthru
          _
      $region12: #{tpu_custom_call.1} parent=5 // pred_fallthru
        _
      %p284 = scmp.lt.s32.totalorder %s19, 2
      // Predicated region
      $region37: #{tpu_custom_call.1} parent=5 // pred_check
        %p285 = pneg %p284
      $region38: #{tpu_custom_call.1} parent=5 // pred_check_branch
        %287 = sbr.rel (%p285) target = $region40
      $region39: #{tpu_custom_call.1} parent=5 // pred_region
        // Predicated region
        $region41: #{tpu_custom_call.1} parent=39 // pred_check
          %p288 = pneg %p39
        $region42: #{tpu_custom_call.1} parent=39 // pred_check_branch
          %290 = sbr.rel (%p288) target = $region44
        $region43: #{tpu_custom_call.1} parent=39 // pred_region
          %s291 = smul.u32 8, %s19
          %p292 = scmp.lt.s32.totalorder %s291, 15
          %s293 = scalar_select %p292, %s291, 15
          %s294 = smul.addr %s293, 2
          %s295 = smul.addr %s294, 4
          %s296 = scalar_lea.vmem %s0, %s295
          %s297 = smul.u32 8, %s19
        $region44: #{tpu_custom_call.1} parent=39 // pred_fallthru
          _
        // Predicated region
        $region45: #{tpu_custom_call.1} parent=39 // pred_check
          %p298 = pneg %p65
        $region46: #{tpu_custom_call.1} parent=39 // pred_check_branch
          %300 = sbr.rel (%p298) target = $region48
        $region47: #{tpu_custom_call.1} parent=39 // pred_region
          %s301 = smul.u32 8, %s19
          %p302 = scmp.lt.s32.totalorder %s301, 15
          %s303 = scalar_select %p302, %s301, 15
          %s304 = smul.addr %s303, 2
          %s305 = smul.addr %s304, 4
          %s306 = scalar_lea.vmem %s1, %s305
          %s307 = smul.u32 8, %s19
        $region48: #{tpu_custom_call.1} parent=39 // pred_fallthru
          _
      $region40: #{tpu_custom_call.1} parent=5 // pred_fallthru
        _
      %p308 = scmp.le.s32.totalorder 1, %s19
      %p309 = scmp.lt.s32.totalorder %s19, 3
      %p310 = pnand %p308, %p309
      %p311 = pneg %p310
      // Predicated region
      $region49: #{tpu_custom_call.1} parent=5 // pred_check
        _
      $region50: #{tpu_custom_call.1} parent=5 // pred_check_branch
        %313 = sbr.rel (%p310) target = $region52
      $region51: #{tpu_custom_call.1} parent=5 // pred_region
        %s314 = ssub.s32 %s19, 1
        // Predicated region
        $region53: #{tpu_custom_call.1} parent=51 // pred_check
          %p315 = pneg %p92
        $region54: #{tpu_custom_call.1} parent=51 // pred_check_branch
          %317 = sbr.rel (%p315) target = $region56
        $region55: #{tpu_custom_call.1} parent=51 // pred_region
          %318 = dma.done [#allocation3], 64
        $region56: #{tpu_custom_call.1} parent=51 // pred_fallthru
          _
        // Predicated region
        $region57: #{tpu_custom_call.1} parent=51 // pred_check
          %p319 = pneg %p113
        $region58: #{tpu_custom_call.1} parent=51 // pred_check_branch
          %321 = sbr.rel (%p319) target = $region60
        $region59: #{tpu_custom_call.1} parent=51 // pred_region
          %322 = dma.done [#allocation6], 2048
        $region60: #{tpu_custom_call.1} parent=51 // pred_fallthru
          _
        // Predicated region
        $region61: #{tpu_custom_call.1} parent=51 // pred_check
          %p323 = pneg %p176
        $region62: #{tpu_custom_call.1} parent=51 // pred_check_branch
          %325 = sbr.rel (%p323) target = $region64
        $region63: #{tpu_custom_call.1} parent=51 // pred_region
          %326 = dma.done [#allocation6], 1024
        $region64: #{tpu_custom_call.1} parent=51 // pred_fallthru
          _
        %s327 = smul.u32 8, %s24
        %p328 = scmp.lt.s32.totalorder %s327, 15
        %s329 = scalar_select %p328, %s327, 15
        %s330 = smul.addr %s329, 2
        %s331 = smul.addr %s330, 4
        %s332 = scalar_lea.vmem %s0, %s331
        %p333 = pneg %p45
        %p334 = pneg %p42
        %s335 = smul.u32 8, %s24
        %p336 = scmp.lt.s32.totalorder %s335, 15
        %s337 = scalar_select %p336, %s335, 15
        %s338 = smul.addr %s337, 2
        %s339 = smul.addr %s338, 4
        %s340 = scalar_lea.vmem %s1, %s339
        %p341 = pneg %p71
        %p342 = pneg %p68
        %p343 = pneg %p92
        %p344 = pneg %p89
        %p345 = pneg %p113
        %p346 = pneg %p110
        %p347 = pneg %p134
        %p348 = pneg %p131
        %p349 = pneg %p155
        %p350 = pneg %p152
        %p351 = pneg %p176
        %p352 = pneg %p173
        %p353 = pneg %p197
        %p354 = pneg %p194
        %p355 = pneg %p223
        %p356 = pneg %p220
        %s357 = sand.u32 %s210, 1
        %s358 = scalar_lea.sflag [#allocation4], %s357
        %s359 = sand.u32 %s210, 1
        %s360 = smul.addr %s359, 64
        %s361 = scalar_lea.vmem [#allocation8], %s360
        %s362 = smul.u32 8, %s24
        %p363 = scmp.lt.s32.totalorder %s362, 15
        %s364 = scalar_select %p363, %s362, 15
        %s365 = smul.addr %s364, 2
        %s366 = smul.addr %s365, 4
        %s367 = scalar_lea.vmem %s0, %s366
        %s368 = smul.u32 8, %s24
        %s369 = smul.u32 8, %s24
        %p370 = scmp.lt.s32.totalorder %s369, 15
        %s371 = scalar_select %p370, %s369, 15
        %s372 = smul.addr %s371, 2
        %s373 = smul.addr %s372, 4
        %s374 = scalar_lea.vmem %s1, %s373
        %s375 = smul.u32 8, %s24
        %s376 = smul.u32 8, %s24
        %v378 = vld [vmem:[%s367] sm:$0xf]
        %v379 = vld [vmem:[%s367 + $0x4] sm:$0xf]
        %v380 = vld [vmem:[%s367 + $0x8] sm:$0xf]
        %v381 = vld [vmem:[%s367 + $0xc] sm:$0xf]
        %v382 = vld [vmem:[%s367 + $0x10] sm:$0xf]
        %v383 = vld [vmem:[%s367 + $0x14] sm:$0xf]
        %v384 = vld [vmem:[%s367 + $0x18] sm:$0xf]
        %v385 = vld [vmem:[%s367 + $0x1c] sm:$0xf]
        %v386 = vld [vmem:[%s367 + $0x20] sm:$0xf]
        %v387 = vld [vmem:[%s367 + $0x24] sm:$0xf]
        %v388 = vld [vmem:[%s367 + $0x28] sm:$0xf]
        %v389 = vld [vmem:[%s367 + $0x2c] sm:$0xf]
        %v390 = vld [vmem:[%s367 + $0x30] sm:$0xf]
        %v391 = vld [vmem:[%s367 + $0x34] sm:$0xf]
        %v392 = vld [vmem:[%s367 + $0x38] sm:$0xf]
        %v393 = vld [vmem:[%s367 + $0x3c] sm:$0xf]
        %v394 = vld [vmem:[%s374] sm:$0xf]
        %v395 = vld [vmem:[%s374 + $0x4] sm:$0xf]
        %v396 = vld [vmem:[%s374 + $0x8] sm:$0xf]
        %v397 = vld [vmem:[%s374 + $0xc] sm:$0xf]
        %v398 = vld [vmem:[%s374 + $0x10] sm:$0xf]
        %v399 = vld [vmem:[%s374 + $0x14] sm:$0xf]
        %v400 = vld [vmem:[%s374 + $0x18] sm:$0xf]
        %v401 = vld [vmem:[%s374 + $0x1c] sm:$0xf]
        %v402 = vld [vmem:[%s374 + $0x20] sm:$0xf]
        %v403 = vld [vmem:[%s374 + $0x24] sm:$0xf]
        %v404 = vld [vmem:[%s374 + $0x28] sm:$0xf]
        %v405 = vld [vmem:[%s374 + $0x2c] sm:$0xf]
        %v406 = vld [vmem:[%s374 + $0x30] sm:$0xf]
        %v407 = vld [vmem:[%s374 + $0x34] sm:$0xf]
        %v408 = vld [vmem:[%s374 + $0x38] sm:$0xf]
        %v409 = vld [vmem:[%s374 + $0x3c] sm:$0xf]
        %v410 = vld [vmem:[%s7] sm:$0x1]
        %v411 = vld [vmem:[%s7 + $0x1] sm:$0x1]
        %v412 = vld [vmem:[%s7 + $0x2] sm:$0x1]
        %v413 = vld [vmem:[%s7 + $0x3] sm:$0x1]
        %v414 = vld [vmem:[%s7 + $0x4] sm:$0x1]
        %v415 = vld [vmem:[%s7 + $0x5] sm:$0x1]
        %v416 = vld [vmem:[%s7 + $0x6] sm:$0x1]
        %v417 = vld [vmem:[%s7 + $0x7] sm:$0x1]
        %v418 = vld [vmem:[#allocation2] sm:$0xf]
        %v435 = vunpack.c.l.b16 %v394
        %v436 = vunpack.c.l.b16 %v395
        %v437 = vunpack.c.l.b16 %v396
        %v438 = vunpack.c.l.b16 %v397
        %v439 = vunpack.c.l.b16 %v398
        %v440 = vunpack.c.l.b16 %v399
        %v441 = vunpack.c.l.b16 %v400
        %v442 = vunpack.c.l.b16 %v401
        %v443 = vunpack.c.l.b16 %v402
        %v444 = vunpack.c.l.b16 %v403
        %v445 = vunpack.c.l.b16 %v404
        %v446 = vunpack.c.l.b16 %v405
        %v447 = vunpack.c.l.b16 %v406
        %v448 = vunpack.c.l.b16 %v407
        %v449 = vunpack.c.l.b16 %v408
        %v450 = vunpack.c.l.b16 %v409
        %v451 = vpack.c.b16 %v436, %v435
        %v452 = vpack.c.b16 %v438, %v437
        %v453 = vpack.c.b16 %v440, %v439
        %v454 = vpack.c.b16 %v442, %v441
        %v455 = vpack.c.b16 %v444, %v443
        %v456 = vpack.c.b16 %v446, %v445
        %v457 = vpack.c.b16 %v448, %v447
        %v458 = vpack.c.b16 %v450, %v449
        %vm459 = vcmask 64512
        %v461 = vsel %vm459, %v451, 0
        %v464 = vsel %vm459, %v452, 0
        %v467 = vsel %vm459, %v453, 0
        %v470 = vsel %vm459, %v454, 0
        %v473 = vsel %vm459, %v455, 0
        %v476 = vsel %vm459, %v456, 0
        %v479 = vsel %vm459, %v457, 0
        %v482 = vsel %vm459, %v458, 0
        %vm484 = vcmask 1043456
        %v486 = vsel %vm484, %v418, 0
        %488 = vmatprep.subr.bf16.mxu0 0
        %489 = vmatpush1.bf16.msra.mxu0 %v486
        %490 = vmatprep.subr.bf16.mxu0 0
        %491 = vmatpush1.bf16.msra.mxu0 0
        %492 = vmatprep.subr.bf16.mxu0 0
        %493 = vmatpush1.bf16.msra.mxu0 0
        %494 = vmatprep.subr.bf16.mxu0 0
        %495 = vmatpush1.bf16.msra.mxu0 0
        %496 = vmatprep.subr.bf16.mxu0 0
        %497 = vmatpush1.bf16.msra.mxu0 0
        %498 = vmatprep.subr.bf16.mxu0 0
        %499 = vmatpush1.bf16.msra.mxu0 0
        %500 = vmatprep.subr.bf16.mxu0 0
        %501 = vmatpush1.bf16.msra.mxu0 0
        %502 = vmatprep.subr.bf16.mxu0 0
        %503 = vmatpush1.bf16.msra.mxu0 0
        %504 = vmatprep.subr.bf16.mxu0 0
        %505 = vmatpush1.bf16.msra.mxu0 0
        %506 = vmatprep.subr.bf16.mxu0 0
        %507 = vmatpush1.bf16.msra.mxu0 0
        %508 = vmatprep.subr.bf16.mxu0 0
        %509 = vmatpush1.bf16.msra.mxu0 0
        %510 = vmatprep.subr.bf16.mxu0 0
        %511 = vmatpush1.bf16.msra.mxu0 0
        %512 = vmatprep.subr.bf16.mxu0 0
        %513 = vmatpush1.bf16.msra.mxu0 0
        %514 = vmatprep.subr.bf16.mxu0 0
        %515 = vmatpush1.bf16.msra.mxu0 0
        %516 = vmatprep.subr.bf16.mxu0 0
        %517 = vmatpush1.bf16.msra.mxu0 0
        %518 = vmatprep.subr.bf16.mxu0 0
        %519 = vmatpush1.bf16.msra.mxu0 0
        %520 = vmatprep.mubr.bf16.mxu0 0
        %521 = vmatmul.mubr.bf16.gmra.mrb[0].mxu0 %v461
        %v522 = vpop.f32.mrb[0].mxu0
        %v523 = vadd.f32 0.0, %v522
        %v524 = vpop.f32.mrb[0].mxu0
        %v525 = vpop.f32.mrb[0].mxu0
        %v526 = vadd.f32 0.0, %v525
        %v527 = vpop.f32.mrb[0].mxu0
        %528 = vmatprep.mubr.bf16.mxu0 0
        %529 = vmatmul.mubr.bf16.gmra.mrb[0].mxu0 %v464
        %v530 = vpop.f32.mrb[0].mxu0
        %v531 = vadd.f32 0.0, %v530
        %v532 = vpop.f32.mrb[0].mxu0
        %v533 = vpop.f32.mrb[0].mxu0
        %v534 = vadd.f32 0.0, %v533
        %v535 = vpop.f32.mrb[0].mxu0
        %536 = vmatprep.mubr.bf16.mxu0 0
        %537 = vmatmul.mubr.bf16.gmra.mrb[0].mxu0 %v467
        %v538 = vpop.f32.mrb[0].mxu0
        %v539 = vadd.f32 0.0, %v538
        %v540 = vpop.f32.mrb[0].mxu0
        %v541 = vpop.f32.mrb[0].mxu0
        %v542 = vadd.f32 0.0, %v541
        %v543 = vpop.f32.mrb[0].mxu0
        %544 = vmatprep.mubr.bf16.mxu0 0
        %545 = vmatmul.mubr.bf16.gmra.mrb[0].mxu0 %v470
        %v546 = vpop.f32.mrb[0].mxu0
        %v547 = vadd.f32 0.0, %v546
        %v548 = vpop.f32.mrb[0].mxu0
        %v549 = vpop.f32.mrb[0].mxu0
        %v550 = vadd.f32 0.0, %v549
        %v551 = vpop.f32.mrb[0].mxu0
        %552 = vmatprep.mubr.bf16.mxu0 0
        %553 = vmatmul.mubr.bf16.gmra.mrb[0].mxu0 %v473
        %v554 = vpop.f32.mrb[0].mxu0
        %v555 = vadd.f32 0.0, %v554
        %v556 = vpop.f32.mrb[0].mxu0
        %v557 = vpop.f32.mrb[0].mxu0
        %v558 = vadd.f32 0.0, %v557
        %v559 = vpop.f32.mrb[0].mxu0
        %560 = vmatprep.mubr.bf16.mxu0 0
        %561 = vmatmul.mubr.bf16.gmra.mrb[0].mxu0 %v476
        %v562 = vpop.f32.mrb[0].mxu0
        %v563 = vadd.f32 0.0, %v562
        %v564 = vpop.f32.mrb[0].mxu0
        %v565 = vpop.f32.mrb[0].mxu0
        %v566 = vadd.f32 0.0, %v565
        %v567 = vpop.f32.mrb[0].mxu0
        %568 = vmatprep.mubr.bf16.mxu0 0
        %569 = vmatmul.mubr.bf16.gmra.mrb[0].mxu0 %v479
        %v570 = vpop.f32.mrb[0].mxu0
        %v571 = vadd.f32 0.0, %v570
        %v572 = vpop.f32.mrb[0].mxu0
        %v573 = vpop.f32.mrb[0].mxu0
        %v574 = vadd.f32 0.0, %v573
        %v575 = vpop.f32.mrb[0].mxu0
        %576 = vmatprep.mubr.bf16.mxu0 0
        %577 = vmatmul.mubr.bf16.gmra.mrb[0].mxu0 %v482
        %v578 = vpop.f32.mrb[0].mxu0
        %v579 = vadd.f32 0.0, %v578
        %v580 = vpop.f32.mrb[0].mxu0
        %v581 = vpop.f32.mrb[0].mxu0
        %v582 = vadd.f32 0.0, %v581
        %v583 = vpop.f32.mrb[0].mxu0
        %584 = vdwg.mxu0
        %v585 = vpack.c.bf16 %v526, %v523
        %v586 = vpack.c.bf16 %v534, %v531
        %v587 = vpack.c.bf16 %v542, %v539
        %v588 = vpack.c.bf16 %v550, %v547
        %v589 = vpack.c.bf16 %v558, %v555
        %v590 = vpack.c.bf16 %v566, %v563
        %v591 = vpack.c.bf16 %v574, %v571
        %v592 = vpack.c.bf16 %v582, %v579
        %v595 = vunpack.c.l.b16 %v378
        %v596 = vunpack.c.l.b16 %v379
        %v597 = vpack.c.b16 %v596, %v595
        %vm598 = vcmask 130048
        %v600 = vsel %vm598, %v597, 0
        %602 = vmatprep.subr.bf16.mxu0 0
        %603 = vmatpush1.bf16.msra.mxu0 %v585
        %604 = vmatprep.subr.bf16.mxu0 0
        %605 = vmatpush1.bf16.msra.mxu0 0
        %606 = vmatprep.subr.bf16.mxu0 0
        %607 = vmatpush1.bf16.msra.mxu0 0
        %608 = vmatprep.subr.bf16.mxu0 0
        %609 = vmatpush1.bf16.msra.mxu0 0
        %610 = vmatprep.subr.bf16.mxu0 0
        %611 = vmatpush1.bf16.msra.mxu0 0
        %612 = vmatprep.subr.bf16.mxu0 0
        %613 = vmatpush1.bf16.msra.mxu0 0
        %614 = vmatprep.subr.bf16.mxu0 0
        %615 = vmatpush1.bf16.msra.mxu0 0
        %616 = vmatprep.subr.bf16.mxu0 0
        %617 = vmatpush1.bf16.msra.mxu0 0
        %618 = vmatprep.subr.bf16.mxu0 0
        %619 = vmatpush1.bf16.msra.mxu0 0
        %620 = vmatprep.subr.bf16.mxu0 0
        %621 = vmatpush1.bf16.msra.mxu0 0
        %622 = vmatprep.subr.bf16.mxu0 0
        %623 = vmatpush1.bf16.msra.mxu0 0
        %624 = vmatprep.subr.bf16.mxu0 0
        %625 = vmatpush1.bf16.msra.mxu0 0
        %626 = vmatprep.subr.bf16.mxu0 0
        %627 = vmatpush1.bf16.msra.mxu0 0
        %628 = vmatprep.subr.bf16.mxu0 0
        %629 = vmatpush1.bf16.msra.mxu0 0
        %630 = vmatprep.subr.bf16.mxu0 0
        %631 = vmatpush1.bf16.msra.mxu0 0
        %632 = vmatprep.subr.bf16.mxu0 0
        %633 = vmatpush1.bf16.msra.mxu0 0
        %634 = vmatprep.mubr.bf16.mxu0 0
        %635 = vmatmul.mubr.bf16.gmra.mrb[0].mxu0 %v600
        %v636 = vpop.f32.mrb[0].mxu0
        %v637 = vadd.f32 0.0, %v636
        %v638 = vpop.f32.mrb[0].mxu0
        %v639 = vpop.f32.mrb[0].mxu0
        %v640 = vadd.f32 0.0, %v639
        %v641 = vpop.f32.mrb[0].mxu0
        %642 = vdwg.mxu0
        %v645 = vunpack.c.l.b16 %v380
        %v646 = vunpack.c.l.b16 %v381
        %v647 = vpack.c.b16 %v646, %v645
        %v649 = vsel %vm598, %v647, 0
        %651 = vmatprep.subr.bf16.mxu0 0
        %652 = vmatpush1.bf16.msra.mxu0 %v586
        %653 = vmatprep.subr.bf16.mxu0 0
        %654 = vmatpush1.bf16.msra.mxu0 0
        %655 = vmatprep.subr.bf16.mxu0 0
        %656 = vmatpush1.bf16.msra.mxu0 0
        %657 = vmatprep.subr.bf16.mxu0 0
        %658 = vmatpush1.bf16.msra.mxu0 0
        %659 = vmatprep.subr.bf16.mxu0 0
        %660 = vmatpush1.bf16.msra.mxu0 0
        %661 = vmatprep.subr.bf16.mxu0 0
        %662 = vmatpush1.bf16.msra.mxu0 0
        %663 = vmatprep.subr.bf16.mxu0 0
        %664 = vmatpush1.bf16.msra.mxu0 0
        %665 = vmatprep.subr.bf16.mxu0 0
        %666 = vmatpush1.bf16.msra.mxu0 0
        %667 = vmatprep.subr.bf16.mxu0 0
        %668 = vmatpush1.bf16.msra.mxu0 0
        %669 = vmatprep.subr.bf16.mxu0 0
        %670 = vmatpush1.bf16.msra.mxu0 0
        %671 = vmatprep.subr.bf16.mxu0 0
        %672 = vmatpush1.bf16.msra.mxu0 0
        %673 = vmatprep.subr.bf16.mxu0 0
        %674 = vmatpush1.bf16.msra.mxu0 0
        %675 = vmatprep.subr.bf16.mxu0 0
        %676 = vmatpush1.bf16.msra.mxu0 0
        %677 = vmatprep.subr.bf16.mxu0 0
        %678 = vmatpush1.bf16.msra.mxu0 0
        %679 = vmatprep.subr.bf16.mxu0 0
        %680 = vmatpush1.bf16.msra.mxu0 0
        %681 = vmatprep.subr.bf16.mxu0 0
        %682 = vmatpush1.bf16.msra.mxu0 0
        %683 = vmatprep.mubr.bf16.mxu0 0
        %684 = vmatmul.mubr.bf16.gmra.mrb[0].mxu0 %v649
        %v685 = vpop.f32.mrb[0].mxu0
        %v686 = vadd.f32 0.0, %v685
        %v687 = vpop.f32.mrb[0].mxu0
        %v688 = vpop.f32.mrb[0].mxu0
        %v689 = vadd.f32 0.0, %v688
        %v690 = vpop.f32.mrb[0].mxu0
        %691 = vdwg.mxu0
        %v694 = vunpack.c.l.b16 %v382
        %v695 = vunpack.c.l.b16 %v383
        %v696 = vpack.c.b16 %v695, %v694
        %v698 = vsel %vm598, %v696, 0
        %700 = vmatprep.subr.bf16.mxu0 0
        %701 = vmatpush1.bf16.msra.mxu0 %v587
        %702 = vmatprep.subr.bf16.mxu0 0
        %703 = vmatpush1.bf16.msra.mxu0 0
        %704 = vmatprep.subr.bf16.mxu0 0
        %705 = vmatpush1.bf16.msra.mxu0 0
        %706 = vmatprep.subr.bf16.mxu0 0
        %707 = vmatpush1.bf16.msra.mxu0 0
        %708 = vmatprep.subr.bf16.mxu0 0
        %709 = vmatpush1.bf16.msra.mxu0 0
        %710 = vmatprep.subr.bf16.mxu0 0
        %711 = vmatpush1.bf16.msra.mxu0 0
        %712 = vmatprep.subr.bf16.mxu0 0
        %713 = vmatpush1.bf16.msra.mxu0 0
        %714 = vmatprep.subr.bf16.mxu0 0
        %715 = vmatpush1.bf16.msra.mxu0 0
        %716 = vmatprep.subr.bf16.mxu0 0
        %717 = vmatpush1.bf16.msra.mxu0 0
        %718 = vmatprep.subr.bf16.mxu0 0
        %719 = vmatpush1.bf16.msra.mxu0 0
        %720 = vmatprep.subr.bf16.mxu0 0
        %721 = vmatpush1.bf16.msra.mxu0 0
        %722 = vmatprep.subr.bf16.mxu0 0
        %723 = vmatpush1.bf16.msra.mxu0 0
        %724 = vmatprep.subr.bf16.mxu0 0
        %725 = vmatpush1.bf16.msra.mxu0 0
        %726 = vmatprep.subr.bf16.mxu0 0
        %727 = vmatpush1.bf16.msra.mxu0 0
        %728 = vmatprep.subr.bf16.mxu0 0
        %729 = vmatpush1.bf16.msra.mxu0 0
        %730 = vmatprep.subr.bf16.mxu0 0
        %731 = vmatpush1.bf16.msra.mxu0 0
        %732 = vmatprep.mubr.bf16.mxu0 0
        %733 = vmatmul.mubr.bf16.gmra.mrb[0].mxu0 %v698
        %v734 = vpop.f32.mrb[0].mxu0
        %v735 = vadd.f32 0.0, %v734
        %v736 = vpop.f32.mrb[0].mxu0
        %v737 = vpop.f32.mrb[0].mxu0
        %v738 = vadd.f32 0.0, %v737
        %v739 = vpop.f32.mrb[0].mxu0
        %740 = vdwg.mxu0
        %v743 = vunpack.c.l.b16 %v384
        %v744 = vunpack.c.l.b16 %v385
        %v745 = vpack.c.b16 %v744, %v743
        %v747 = vsel %vm598, %v745, 0
        %749 = vmatprep.subr.bf16.mxu0 0
        %750 = vmatpush1.bf16.msra.mxu0 %v588
        %751 = vmatprep.subr.bf16.mxu0 0
        %752 = vmatpush1.bf16.msra.mxu0 0
        %753 = vmatprep.subr.bf16.mxu0 0
        %754 = vmatpush1.bf16.msra.mxu0 0
        %755 = vmatprep.subr.bf16.mxu0 0
        %756 = vmatpush1.bf16.msra.mxu0 0
        %757 = vmatprep.subr.bf16.mxu0 0
        %758 = vmatpush1.bf16.msra.mxu0 0
        %759 = vmatprep.subr.bf16.mxu0 0
        %760 = vmatpush1.bf16.msra.mxu0 0
        %761 = vmatprep.subr.bf16.mxu0 0
        %762 = vmatpush1.bf16.msra.mxu0 0
        %763 = vmatprep.subr.bf16.mxu0 0
        %764 = vmatpush1.bf16.msra.mxu0 0
        %765 = vmatprep.subr.bf16.mxu0 0
        %766 = vmatpush1.bf16.msra.mxu0 0
        %767 = vmatprep.subr.bf16.mxu0 0
        %768 = vmatpush1.bf16.msra.mxu0 0
        %769 = vmatprep.subr.bf16.mxu0 0
        %770 = vmatpush1.bf16.msra.mxu0 0
        %771 = vmatprep.subr.bf16.mxu0 0
        %772 = vmatpush1.bf16.msra.mxu0 0
        %773 = vmatprep.subr.bf16.mxu0 0
        %774 = vmatpush1.bf16.msra.mxu0 0
        %775 = vmatprep.subr.bf16.mxu0 0
        %776 = vmatpush1.bf16.msra.mxu0 0
        %777 = vmatprep.subr.bf16.mxu0 0
        %778 = vmatpush1.bf16.msra.mxu0 0
        %779 = vmatprep.subr.bf16.mxu0 0
        %780 = vmatpush1.bf16.msra.mxu0 0
        %781 = vmatprep.mubr.bf16.mxu0 0
        %782 = vmatmul.mubr.bf16.gmra.mrb[0].mxu0 %v747
        %v783 = vpop.f32.mrb[0].mxu0
        %v784 = vadd.f32 0.0, %v783
        %v785 = vpop.f32.mrb[0].mxu0
        %v786 = vpop.f32.mrb[0].mxu0
        %v787 = vadd.f32 0.0, %v786
        %v788 = vpop.f32.mrb[0].mxu0
        %789 = vdwg.mxu0
        %v792 = vunpack.c.l.b16 %v386
        %v793 = vunpack.c.l.b16 %v387
        %v794 = vpack.c.b16 %v793, %v792
        %v796 = vsel %vm598, %v794, 0
        %798 = vmatprep.subr.bf16.mxu0 0
        %799 = vmatpush1.bf16.msra.mxu0 %v589
        %800 = vmatprep.subr.bf16.mxu0 0
        %801 = vmatpush1.bf16.msra.mxu0 0
        %802 = vmatprep.subr.bf16.mxu0 0
        %803 = vmatpush1.bf16.msra.mxu0 0
        %804 = vmatprep.subr.bf16.mxu0 0
        %805 = vmatpush1.bf16.msra.mxu0 0
        %806 = vmatprep.subr.bf16.mxu0 0
        %807 = vmatpush1.bf16.msra.mxu0 0
        %808 = vmatprep.subr.bf16.mxu0 0
        %809 = vmatpush1.bf16.msra.mxu0 0
        %810 = vmatprep.subr.bf16.mxu0 0
        %811 = vmatpush1.bf16.msra.mxu0 0
        %812 = vmatprep.subr.bf16.mxu0 0
        %813 = vmatpush1.bf16.msra.mxu0 0
        %814 = vmatprep.subr.bf16.mxu0 0
        %815 = vmatpush1.bf16.msra.mxu0 0
        %816 = vmatprep.subr.bf16.mxu0 0
        %817 = vmatpush1.bf16.msra.mxu0 0
        %818 = vmatprep.subr.bf16.mxu0 0
        %819 = vmatpush1.bf16.msra.mxu0 0
        %820 = vmatprep.subr.bf16.mxu0 0
        %821 = vmatpush1.bf16.msra.mxu0 0
        %822 = vmatprep.subr.bf16.mxu0 0
        %823 = vmatpush1.bf16.msra.mxu0 0
        %824 = vmatprep.subr.bf16.mxu0 0
        %825 = vmatpush1.bf16.msra.mxu0 0
        %826 = vmatprep.subr.bf16.mxu0 0
        %827 = vmatpush1.bf16.msra.mxu0 0
        %828 = vmatprep.subr.bf16.mxu0 0
        %829 = vmatpush1.bf16.msra.mxu0 0
        %830 = vmatprep.mubr.bf16.mxu0 0
        %831 = vmatmul.mubr.bf16.gmra.mrb[0].mxu0 %v796
        %v832 = vpop.f32.mrb[0].mxu0
        %v833 = vadd.f32 0.0, %v832
        %v834 = vpop.f32.mrb[0].mxu0
        %v835 = vpop.f32.mrb[0].mxu0
        %v836 = vadd.f32 0.0, %v835
        %v837 = vpop.f32.mrb[0].mxu0
        %838 = vdwg.mxu0
        %v841 = vunpack.c.l.b16 %v388
        %v842 = vunpack.c.l.b16 %v389
        %v843 = vpack.c.b16 %v842, %v841
        %v845 = vsel %vm598, %v843, 0
        %847 = vmatprep.subr.bf16.mxu0 0
        %848 = vmatpush1.bf16.msra.mxu0 %v590
        %849 = vmatprep.subr.bf16.mxu0 0
        %850 = vmatpush1.bf16.msra.mxu0 0
        %851 = vmatprep.subr.bf16.mxu0 0
        %852 = vmatpush1.bf16.msra.mxu0 0
        %853 = vmatprep.subr.bf16.mxu0 0
        %854 = vmatpush1.bf16.msra.mxu0 0
        %855 = vmatprep.subr.bf16.mxu0 0
        %856 = vmatpush1.bf16.msra.mxu0 0
        %857 = vmatprep.subr.bf16.mxu0 0
        %858 = vmatpush1.bf16.msra.mxu0 0
        %859 = vmatprep.subr.bf16.mxu0 0
        %860 = vmatpush1.bf16.msra.mxu0 0
        %861 = vmatprep.subr.bf16.mxu0 0
        %862 = vmatpush1.bf16.msra.mxu0 0
        %863 = vmatprep.subr.bf16.mxu0 0
        %864 = vmatpush1.bf16.msra.mxu0 0
        %865 = vmatprep.subr.bf16.mxu0 0
        %866 = vmatpush1.bf16.msra.mxu0 0
        %867 = vmatprep.subr.bf16.mxu0 0
        %868 = vmatpush1.bf16.msra.mxu0 0
        %869 = vmatprep.subr.bf16.mxu0 0
        %870 = vmatpush1.bf16.msra.mxu0 0
        %871 = vmatprep.subr.bf16.mxu0 0
        %872 = vmatpush1.bf16.msra.mxu0 0
        %873 = vmatprep.subr.bf16.mxu0 0
        %874 = vmatpush1.bf16.msra.mxu0 0
        %875 = vmatprep.subr.bf16.mxu0 0
        %876 = vmatpush1.bf16.msra.mxu0 0
        %877 = vmatprep.subr.bf16.mxu0 0
        %878 = vmatpush1.bf16.msra.mxu0 0
        %879 = vmatprep.mubr.bf16.mxu0 0
        %880 = vmatmul.mubr.bf16.gmra.mrb[0].mxu0 %v845
        %v881 = vpop.f32.mrb[0].mxu0
        %v882 = vadd.f32 0.0, %v881
        %v883 = vpop.f32.mrb[0].mxu0
        %v884 = vpop.f32.mrb[0].mxu0
        %v885 = vadd.f32 0.0, %v884
        %v886 = vpop.f32.mrb[0].mxu0
        %887 = vdwg.mxu0
        %v890 = vunpack.c.l.b16 %v390
        %v891 = vunpack.c.l.b16 %v391
        %v892 = vpack.c.b16 %v891, %v890
        %v894 = vsel %vm598, %v892, 0
        %896 = vmatprep.subr.bf16.mxu0 0
        %897 = vmatpush1.bf16.msra.mxu0 %v591
        %898 = vmatprep.subr.bf16.mxu0 0
        %899 = vmatpush1.bf16.msra.mxu0 0
        %900 = vmatprep.subr.bf16.mxu0 0
        %901 = vmatpush1.bf16.msra.mxu0 0
        %902 = vmatprep.subr.bf16.mxu0 0
        %903 = vmatpush1.bf16.msra.mxu0 0
        %904 = vmatprep.subr.bf16.mxu0 0
        %905 = vmatpush1.bf16.msra.mxu0 0
        %906 = vmatprep.subr.bf16.mxu0 0
        %907 = vmatpush1.bf16.msra.mxu0 0
        %908 = vmatprep.subr.bf16.mxu0 0
        %909 = vmatpush1.bf16.msra.mxu0 0
        %910 = vmatprep.subr.bf16.mxu0 0
        %911 = vmatpush1.bf16.msra.mxu0 0
        %912 = vmatprep.subr.bf16.mxu0 0
        %913 = vmatpush1.bf16.msra.mxu0 0
        %914 = vmatprep.subr.bf16.mxu0 0
        %915 = vmatpush1.bf16.msra.mxu0 0
        %916 = vmatprep.subr.bf16.mxu0 0
        %917 = vmatpush1.bf16.msra.mxu0 0
        %918 = vmatprep.subr.bf16.mxu0 0
        %919 = vmatpush1.bf16.msra.mxu0 0
        %920 = vmatprep.subr.bf16.mxu0 0
        %921 = vmatpush1.bf16.msra.mxu0 0
        %922 = vmatprep.subr.bf16.mxu0 0
        %923 = vmatpush1.bf16.msra.mxu0 0
        %924 = vmatprep.subr.bf16.mxu0 0
        %925 = vmatpush1.bf16.msra.mxu0 0
        %926 = vmatprep.subr.bf16.mxu0 0
        %927 = vmatpush1.bf16.msra.mxu0 0
        %928 = vmatprep.mubr.bf16.mxu0 0
        %929 = vmatmul.mubr.bf16.gmra.mrb[0].mxu0 %v894
        %v930 = vpop.f32.mrb[0].mxu0
        %v931 = vadd.f32 0.0, %v930
        %v932 = vpop.f32.mrb[0].mxu0
        %v933 = vpop.f32.mrb[0].mxu0
        %v934 = vadd.f32 0.0, %v933
        %v935 = vpop.f32.mrb[0].mxu0
        %936 = vdwg.mxu0
        %v939 = vunpack.c.l.b16 %v392
        %v940 = vunpack.c.l.b16 %v393
        %v941 = vpack.c.b16 %v940, %v939
        %v943 = vsel %vm598, %v941, 0
        %945 = vmatprep.subr.bf16.mxu0 0
        %946 = vmatpush1.bf16.msra.mxu0 %v592
        %947 = vmatprep.subr.bf16.mxu0 0
        %948 = vmatpush1.bf16.msra.mxu0 0
        %949 = vmatprep.subr.bf16.mxu0 0
        %950 = vmatpush1.bf16.msra.mxu0 0
        %951 = vmatprep.subr.bf16.mxu0 0
        %952 = vmatpush1.bf16.msra.mxu0 0
        %953 = vmatprep.subr.bf16.mxu0 0
        %954 = vmatpush1.bf16.msra.mxu0 0
        %955 = vmatprep.subr.bf16.mxu0 0
        %956 = vmatpush1.bf16.msra.mxu0 0
        %957 = vmatprep.subr.bf16.mxu0 0
        %958 = vmatpush1.bf16.msra.mxu0 0
        %959 = vmatprep.subr.bf16.mxu0 0
        %960 = vmatpush1.bf16.msra.mxu0 0
        %961 = vmatprep.subr.bf16.mxu0 0
        %962 = vmatpush1.bf16.msra.mxu0 0
        %963 = vmatprep.subr.bf16.mxu0 0
        %964 = vmatpush1.bf16.msra.mxu0 0
        %965 = vmatprep.subr.bf16.mxu0 0
        %966 = vmatpush1.bf16.msra.mxu0 0
        %967 = vmatprep.subr.bf16.mxu0 0
        %968 = vmatpush1.bf16.msra.mxu0 0
        %969 = vmatprep.subr.bf16.mxu0 0
        %970 = vmatpush1.bf16.msra.mxu0 0
        %971 = vmatprep.subr.bf16.mxu0 0
        %972 = vmatpush1.bf16.msra.mxu0 0
        %973 = vmatprep.subr.bf16.mxu0 0
        %974 = vmatpush1.bf16.msra.mxu0 0
        %975 = vmatprep.subr.bf16.mxu0 0
        %976 = vmatpush1.bf16.msra.mxu0 0
        %977 = vmatprep.mubr.bf16.mxu0 0
        %978 = vmatmul.mubr.bf16.gmra.mrb[0].mxu0 %v943
        %v979 = vpop.f32.mrb[0].mxu0
        %v980 = vadd.f32 0.0, %v979
        %v981 = vpop.f32.mrb[0].mxu0
        %v982 = vpop.f32.mrb[0].mxu0
        %v983 = vadd.f32 0.0, %v982
        %v984 = vpop.f32.mrb[0].mxu0
        %985 = vdwg.mxu0
        %v986 = vlaneseq
        %v987 = vshrl.u32 %v986, 7
        %v988 = vsub.s32 0, %v987
        %v989 = vrot.slane %v410, %v988
        %v990 = vadd.f32 %v637, %v989
        %v991 = vadd.f32 %v640, %v989
        %v992 = vadd.f32 %v686, %v989
        %v993 = vadd.f32 %v689, %v989
        %v994 = vadd.f32 %v735, %v989
        %v995 = vadd.f32 %v738, %v989
        %v996 = vadd.f32 %v784, %v989
        %v997 = vadd.f32 %v787, %v989
        %v998 = vadd.f32 %v833, %v989
        %v999 = vadd.f32 %v836, %v989
        %v1000 = vadd.f32 %v882, %v989
        %v1001 = vadd.f32 %v885, %v989
        %v1002 = vadd.f32 %v931, %v989
        %v1003 = vadd.f32 %v934, %v989
        %v1004 = vadd.f32 %v980, %v989
        %v1005 = vadd.f32 %v983, %v989
        %v1006 = vmax.f32 %v990, 0.0
        %v1007 = vmax.f32 %v991, 0.0
        %v1008 = vmax.f32 %v992, 0.0
        %v1009 = vmax.f32 %v993, 0.0
        %v1010 = vmax.f32 %v994, 0.0
        %v1011 = vmax.f32 %v995, 0.0
        %v1012 = vmax.f32 %v996, 0.0
        %v1013 = vmax.f32 %v997, 0.0
        %v1014 = vmax.f32 %v998, 0.0
        %v1015 = vmax.f32 %v999, 0.0
        %v1016 = vmax.f32 %v1000, 0.0
        %v1017 = vmax.f32 %v1001, 0.0
        %v1018 = vmax.f32 %v1002, 0.0
        %v1019 = vmax.f32 %v1003, 0.0
        %v1020 = vmax.f32 %v1004, 0.0
        %v1021 = vmax.f32 %v1005, 0.0
        %v1022 = vlaneseq
        %v1023 = vshrl.u32 %v1022, 7
        %v1024 = vsub.s32 0, %v1023
        %v1025 = vrot.slane %v411, %v1024
        %v1026 = vmul.f32 %v1006, %v1025
        %v1027 = vmul.f32 %v1007, %v1025
        %v1028 = vmul.f32 %v1008, %v1025
        %v1029 = vmul.f32 %v1009, %v1025
        %v1030 = vmul.f32 %v1010, %v1025
        %v1031 = vmul.f32 %v1011, %v1025
        %v1032 = vmul.f32 %v1012, %v1025
        %v1033 = vmul.f32 %v1013, %v1025
        %v1034 = vmul.f32 %v1014, %v1025
        %v1035 = vmul.f32 %v1015, %v1025
        %v1036 = vmul.f32 %v1016, %v1025
        %v1037 = vmul.f32 %v1017, %v1025
        %v1038 = vmul.f32 %v1018, %v1025
        %v1039 = vmul.f32 %v1019, %v1025
        %v1040 = vmul.f32 %v1020, %v1025
        %v1041 = vmul.f32 %v1021, %v1025
        %v1042 = vlaneseq
        %v1043 = vshrl.u32 %v1042, 7
        %v1044 = vsub.s32 0, %v1043
        %v1045 = vrot.slane %v412, %v1044
        %v1046 = vadd.f32 %v1026, %v1045
        %v1047 = vadd.f32 %v1027, %v1045
        %v1048 = vadd.f32 %v1028, %v1045
        %v1049 = vadd.f32 %v1029, %v1045
        %v1050 = vadd.f32 %v1030, %v1045
        %v1051 = vadd.f32 %v1031, %v1045
        %v1052 = vadd.f32 %v1032, %v1045
        %v1053 = vadd.f32 %v1033, %v1045
        %v1054 = vadd.f32 %v1034, %v1045
        %v1055 = vadd.f32 %v1035, %v1045
        %v1056 = vadd.f32 %v1036, %v1045
        %v1057 = vadd.f32 %v1037, %v1045
        %v1058 = vadd.f32 %v1038, %v1045
        %v1059 = vadd.f32 %v1039, %v1045
        %v1060 = vadd.f32 %v1040, %v1045
        %v1061 = vadd.f32 %v1041, %v1045
        %v1062 = vpack.c.bf16 %v1047, %v1046
        %v1063 = vpack.c.bf16 %v1049, %v1048
        %v1064 = vpack.c.bf16 %v1051, %v1050
        %v1065 = vpack.c.bf16 %v1053, %v1052
        %v1066 = vpack.c.bf16 %v1055, %v1054
        %v1067 = vpack.c.bf16 %v1057, %v1056
        %v1068 = vpack.c.bf16 %v1059, %v1058
        %v1069 = vpack.c.bf16 %v1061, %v1060
        %v1070 = vld [vmem:[#allocation5] sm:$0xff]
        %v1071 = vld [vmem:[#allocation5 + $0x8] sm:$0xff]
        %v1072 = vld [vmem:[#allocation5 + $0x10] sm:$0xff]
        %v1073 = vld [vmem:[#allocation5 + $0x18] sm:$0xff]
        %v1074 = vld [vmem:[#allocation5 + $0x20] sm:$0xff]
        %v1075 = vld [vmem:[#allocation5 + $0x28] sm:$0xff]
        %v1076 = vld [vmem:[#allocation5 + $0x30] sm:$0xff]
        %v1077 = vld [vmem:[#allocation5 + $0x38] sm:$0xff]
        %v1078 = vld [vmem:[#allocation5 + $0x40] sm:$0xff]
        %v1079 = vld [vmem:[#allocation5 + $0x48] sm:$0xff]
        %v1080 = vld [vmem:[#allocation5 + $0x50] sm:$0xff]
        %v1081 = vld [vmem:[#allocation5 + $0x58] sm:$0xff]
        %v1082 = vld [vmem:[#allocation5 + $0x60] sm:$0xff]
        %v1083 = vld [vmem:[#allocation5 + $0x68] sm:$0xff]
        %v1084 = vld [vmem:[#allocation5 + $0x70] sm:$0xff]
        %v1085 = vld [vmem:[#allocation5 + $0x78] sm:$0xff]
        %v1102 = vunpack.c.l.b16 %v1070
        %v1103 = vunpack.c.h.b16 %v1070
        %v1104 = vunpack.c.l.b16 %v1071
        %v1105 = vunpack.c.h.b16 %v1071
        %v1106 = vunpack.c.l.b16 %v1072
        %v1107 = vunpack.c.h.b16 %v1072
        %v1108 = vunpack.c.l.b16 %v1073
        %v1109 = vunpack.c.h.b16 %v1073
        %v1110 = vunpack.c.l.b16 %v1074
        %v1111 = vunpack.c.h.b16 %v1074
        %v1112 = vunpack.c.l.b16 %v1075
        %v1113 = vunpack.c.h.b16 %v1075
        %v1114 = vunpack.c.l.b16 %v1076
        %v1115 = vunpack.c.h.b16 %v1076
        %v1116 = vunpack.c.l.b16 %v1077
        %v1117 = vunpack.c.h.b16 %v1077
        %v1118 = vunpack.c.l.b16 %v1078
        %v1119 = vunpack.c.h.b16 %v1078
        %v1120 = vunpack.c.l.b16 %v1079
        %v1121 = vunpack.c.h.b16 %v1079
        %v1122 = vunpack.c.l.b16 %v1080
        %v1123 = vunpack.c.h.b16 %v1080
        %v1124 = vunpack.c.l.b16 %v1081
        %v1125 = vunpack.c.h.b16 %v1081
        %v1126 = vunpack.c.l.b16 %v1082
        %v1127 = vunpack.c.h.b16 %v1082
        %v1128 = vunpack.c.l.b16 %v1083
        %v1129 = vunpack.c.h.b16 %v1083
        %v1130 = vunpack.c.l.b16 %v1084
        %v1131 = vunpack.c.h.b16 %v1084
        %v1132 = vunpack.c.l.b16 %v1085
        %v1133 = vunpack.c.h.b16 %v1085
        %v1134 = vpack.c.b16 %v1104, %v1102
        %v1135 = vpack.c.b16 %v1105, %v1103
        %v1136 = vpack.c.b16 %v1108, %v1106
        %v1137 = vpack.c.b16 %v1109, %v1107
        %v1138 = vpack.c.b16 %v1112, %v1110
        %v1139 = vpack.c.b16 %v1113, %v1111
        %v1140 = vpack.c.b16 %v1116, %v1114
        %v1141 = vpack.c.b16 %v1117, %v1115
        %v1142 = vpack.c.b16 %v1120, %v1118
        %v1143 = vpack.c.b16 %v1121, %v1119
        %v1144 = vpack.c.b16 %v1124, %v1122
        %v1145 = vpack.c.b16 %v1125, %v1123
        %v1146 = vpack.c.b16 %v1128, %v1126
        %v1147 = vpack.c.b16 %v1129, %v1127
        %v1148 = vpack.c.b16 %v1132, %v1130
        %v1149 = vpack.c.b16 %v1133, %v1131
        %1166 = vmatprep.subr.bf16.mxu0 %v1135
        %1167 = vmatpush1.bf16.msra.mxu0 %v1134
        %1168 = vmatprep.subr.bf16.mxu0 %v1137
        %1169 = vmatpush1.bf16.msra.mxu0 %v1136
        %1170 = vmatprep.subr.bf16.mxu0 %v1139
        %1171 = vmatpush1.bf16.msra.mxu0 %v1138
        %1172 = vmatprep.subr.bf16.mxu0 %v1141
        %1173 = vmatpush1.bf16.msra.mxu0 %v1140
        %1174 = vmatprep.subr.bf16.mxu0 %v1143
        %1175 = vmatpush1.bf16.msra.mxu0 %v1142
        %1176 = vmatprep.subr.bf16.mxu0 %v1145
        %1177 = vmatpush1.bf16.msra.mxu0 %v1144
        %1178 = vmatprep.subr.bf16.mxu0 %v1147
        %1179 = vmatpush1.bf16.msra.mxu0 %v1146
        %1180 = vmatprep.subr.bf16.mxu0 %v1149
        %1181 = vmatpush1.bf16.msra.mxu0 %v1148
        %1182 = vmatprep.subr.bf16.mxu0 0
        %1183 = vmatpush1.bf16.msra.mxu0 0
        %1184 = vmatprep.subr.bf16.mxu0 0
        %1185 = vmatpush1.bf16.msra.mxu0 0
        %1186 = vmatprep.subr.bf16.mxu0 0
        %1187 = vmatpush1.bf16.msra.mxu0 0
        %1188 = vmatprep.subr.bf16.mxu0 0
        %1189 = vmatpush1.bf16.msra.mxu0 0
        %1190 = vmatprep.subr.bf16.mxu0 0
        %1191 = vmatpush1.bf16.msra.mxu0 0
        %1192 = vmatprep.subr.bf16.mxu0 0
        %1193 = vmatpush1.bf16.msra.mxu0 0
        %1194 = vmatprep.subr.bf16.mxu0 0
        %1195 = vmatpush1.bf16.msra.mxu0 0
        %1196 = vmatprep.subr.bf16.mxu0 0
        %1197 = vmatpush1.bf16.msra.mxu0 0
        %1198 = vmatprep.mubr.bf16.mxu0 0
        %1199 = vmatmul.mubr.bf16.gmra.mrb[0].mxu0 %v1062
        %v1200 = vpop.f32.mrb[0].mxu0
        %v1201 = vadd.f32 0.0, %v1200
        %v1202 = vpop.f32.mrb[0].mxu0
        %v1203 = vadd.f32 0.0, %v1202
        %v1204 = vpop.f32.mrb[0].mxu0
        %v1205 = vadd.f32 0.0, %v1204
        %v1206 = vpop.f32.mrb[0].mxu0
        %v1207 = vadd.f32 0.0, %v1206
        %1208 = vmatprep.mubr.bf16.mxu0 0
        %1209 = vmatmul.mubr.bf16.gmra.mrb[0].mxu0 %v1063
        %v1210 = vpop.f32.mrb[0].mxu0
        %v1211 = vadd.f32 0.0, %v1210
        %v1212 = vpop.f32.mrb[0].mxu0
        %v1213 = vadd.f32 0.0, %v1212
        %v1214 = vpop.f32.mrb[0].mxu0
        %v1215 = vadd.f32 0.0, %v1214
        %v1216 = vpop.f32.mrb[0].mxu0
        %v1217 = vadd.f32 0.0, %v1216
        %1218 = vmatprep.mubr.bf16.mxu0 0
        %1219 = vmatmul.mubr.bf16.gmra.mrb[0].mxu0 %v1064
        %v1220 = vpop.f32.mrb[0].mxu0
        %v1221 = vadd.f32 0.0, %v1220
        %v1222 = vpop.f32.mrb[0].mxu0
        %v1223 = vadd.f32 0.0, %v1222
        %v1224 = vpop.f32.mrb[0].mxu0
        %v1225 = vadd.f32 0.0, %v1224
        %v1226 = vpop.f32.mrb[0].mxu0
        %v1227 = vadd.f32 0.0, %v1226
        %1228 = vmatprep.mubr.bf16.mxu0 0
        %1229 = vmatmul.mubr.bf16.gmra.mrb[0].mxu0 %v1065
        %v1230 = vpop.f32.mrb[0].mxu0
        %v1231 = vadd.f32 0.0, %v1230
        %v1232 = vpop.f32.mrb[0].mxu0
        %v1233 = vadd.f32 0.0, %v1232
        %v1234 = vpop.f32.mrb[0].mxu0
        %v1235 = vadd.f32 0.0, %v1234
        %v1236 = vpop.f32.mrb[0].mxu0
        %v1237 = vadd.f32 0.0, %v1236
        %1238 = vmatprep.mubr.bf16.mxu0 0
        %1239 = vmatmul.mubr.bf16.gmra.mrb[0].mxu0 %v1066
        %v1240 = vpop.f32.mrb[0].mxu0
        %v1241 = vadd.f32 0.0, %v1240
        %v1242 = vpop.f32.mrb[0].mxu0
        %v1243 = vadd.f32 0.0, %v1242
        %v1244 = vpop.f32.mrb[0].mxu0
        %v1245 = vadd.f32 0.0, %v1244
        %v1246 = vpop.f32.mrb[0].mxu0
        %v1247 = vadd.f32 0.0, %v1246
        %1248 = vmatprep.mubr.bf16.mxu0 0
        %1249 = vmatmul.mubr.bf16.gmra.mrb[0].mxu0 %v1067
        %v1250 = vpop.f32.mrb[0].mxu0
        %v1251 = vadd.f32 0.0, %v1250
        %v1252 = vpop.f32.mrb[0].mxu0
        %v1253 = vadd.f32 0.0, %v1252
        %v1254 = vpop.f32.mrb[0].mxu0
        %v1255 = vadd.f32 0.0, %v1254
        %v1256 = vpop.f32.mrb[0].mxu0
        %v1257 = vadd.f32 0.0, %v1256
        %1258 = vmatprep.mubr.bf16.mxu0 0
        %1259 = vmatmul.mubr.bf16.gmra.mrb[0].mxu0 %v1068
        %v1260 = vpop.f32.mrb[0].mxu0
        %v1261 = vadd.f32 0.0, %v1260
        %v1262 = vpop.f32.mrb[0].mxu0
        %v1263 = vadd.f32 0.0, %v1262
        %v1264 = vpop.f32.mrb[0].mxu0
        %v1265 = vadd.f32 0.0, %v1264
        %v1266 = vpop.f32.mrb[0].mxu0
        %v1267 = vadd.f32 0.0, %v1266
        %1268 = vmatprep.mubr.bf16.mxu0 0
        %1269 = vmatmul.mubr.bf16.gmra.mrb[0].mxu0 %v1069
        %v1270 = vpop.f32.mrb[0].mxu0
        %v1271 = vadd.f32 0.0, %v1270
        %v1272 = vpop.f32.mrb[0].mxu0
        %v1273 = vadd.f32 0.0, %v1272
        %v1274 = vpop.f32.mrb[0].mxu0
        %v1275 = vadd.f32 0.0, %v1274
        %v1276 = vpop.f32.mrb[0].mxu0
        %v1277 = vadd.f32 0.0, %v1276
        %1278 = vdwg.mxu0
        %v1279 = vpack.c.bf16 %v1205, %v1201
        %v1280 = vpack.c.bf16 %v1215, %v1211
        %v1281 = vpack.c.bf16 %v1225, %v1221
        %v1282 = vpack.c.bf16 %v1235, %v1231
        %v1283 = vpack.c.bf16 %v1245, %v1241
        %v1284 = vpack.c.bf16 %v1255, %v1251
        %v1285 = vpack.c.bf16 %v1265, %v1261
        %v1286 = vpack.c.bf16 %v1275, %v1271
        %1287 = vmatprep.subr.bf16.mxu0 0
        %1288 = vmatpush1.bf16.msra.mxu0 %v1279
        %1289 = vmatprep.subr.bf16.mxu0 0
        %1290 = vmatpush1.bf16.msra.mxu0 0
        %1291 = vmatprep.subr.bf16.mxu0 0
        %1292 = vmatpush1.bf16.msra.mxu0 0
        %1293 = vmatprep.subr.bf16.mxu0 0
        %1294 = vmatpush1.bf16.msra.mxu0 0
        %1295 = vmatprep.subr.bf16.mxu0 0
        %1296 = vmatpush1.bf16.msra.mxu0 0
        %1297 = vmatprep.subr.bf16.mxu0 0
        %1298 = vmatpush1.bf16.msra.mxu0 0
        %1299 = vmatprep.subr.bf16.mxu0 0
        %1300 = vmatpush1.bf16.msra.mxu0 0
        %1301 = vmatprep.subr.bf16.mxu0 0
        %1302 = vmatpush1.bf16.msra.mxu0 0
        %1303 = vmatprep.subr.bf16.mxu0 0
        %1304 = vmatpush1.bf16.msra.mxu0 0
        %1305 = vmatprep.subr.bf16.mxu0 0
        %1306 = vmatpush1.bf16.msra.mxu0 0
        %1307 = vmatprep.subr.bf16.mxu0 0
        %1308 = vmatpush1.bf16.msra.mxu0 0
        %1309 = vmatprep.subr.bf16.mxu0 0
        %1310 = vmatpush1.bf16.msra.mxu0 0
        %1311 = vmatprep.subr.bf16.mxu0 0
        %1312 = vmatpush1.bf16.msra.mxu0 0
        %1313 = vmatprep.subr.bf16.mxu0 0
        %1314 = vmatpush1.bf16.msra.mxu0 0
        %1315 = vmatprep.subr.bf16.mxu0 0
        %1316 = vmatpush1.bf16.msra.mxu0 0
        %1317 = vmatprep.subr.bf16.mxu0 0
        %1318 = vmatpush1.bf16.msra.mxu0 0
        %1319 = vmatprep.mubr.bf16.mxu0 0
        %1320 = vmatmul.mubr.bf16.gmra.mrb[0].mxu0 %v600
        %v1321 = vpop.f32.mrb[0].mxu0
        %v1322 = vadd.f32 0.0, %v1321
        %v1323 = vpop.f32.mrb[0].mxu0
        %v1324 = vpop.f32.mrb[0].mxu0
        %v1325 = vadd.f32 0.0, %v1324
        %v1326 = vpop.f32.mrb[0].mxu0
        %1327 = vdwg.mxu0
        %1328 = vmatprep.subr.bf16.mxu0 0
        %1329 = vmatpush1.bf16.msra.mxu0 %v1280
        %1330 = vmatprep.subr.bf16.mxu0 0
        %1331 = vmatpush1.bf16.msra.mxu0 0
        %1332 = vmatprep.subr.bf16.mxu0 0
        %1333 = vmatpush1.bf16.msra.mxu0 0
        %1334 = vmatprep.subr.bf16.mxu0 0
        %1335 = vmatpush1.bf16.msra.mxu0 0
        %1336 = vmatprep.subr.bf16.mxu0 0
        %1337 = vmatpush1.bf16.msra.mxu0 0
        %1338 = vmatprep.subr.bf16.mxu0 0
        %1339 = vmatpush1.bf16.msra.mxu0 0
        %1340 = vmatprep.subr.bf16.mxu0 0
        %1341 = vmatpush1.bf16.msra.mxu0 0
        %1342 = vmatprep.subr.bf16.mxu0 0
        %1343 = vmatpush1.bf16.msra.mxu0 0
        %1344 = vmatprep.subr.bf16.mxu0 0
        %1345 = vmatpush1.bf16.msra.mxu0 0
        %1346 = vmatprep.subr.bf16.mxu0 0
        %1347 = vmatpush1.bf16.msra.mxu0 0
        %1348 = vmatprep.subr.bf16.mxu0 0
        %1349 = vmatpush1.bf16.msra.mxu0 0
        %1350 = vmatprep.subr.bf16.mxu0 0
        %1351 = vmatpush1.bf16.msra.mxu0 0
        %1352 = vmatprep.subr.bf16.mxu0 0
        %1353 = vmatpush1.bf16.msra.mxu0 0
        %1354 = vmatprep.subr.bf16.mxu0 0
        %1355 = vmatpush1.bf16.msra.mxu0 0
        %1356 = vmatprep.subr.bf16.mxu0 0
        %1357 = vmatpush1.bf16.msra.mxu0 0
        %1358 = vmatprep.subr.bf16.mxu0 0
        %1359 = vmatpush1.bf16.msra.mxu0 0
        %1360 = vmatprep.mubr.bf16.mxu0 0
        %1361 = vmatmul.mubr.bf16.gmra.mrb[0].mxu0 %v649
        %v1362 = vpop.f32.mrb[0].mxu0
        %v1363 = vadd.f32 0.0, %v1362
        %v1364 = vpop.f32.mrb[0].mxu0
        %v1365 = vpop.f32.mrb[0].mxu0
        %v1366 = vadd.f32 0.0, %v1365
        %v1367 = vpop.f32.mrb[0].mxu0
        %1368 = vdwg.mxu0
        %1369 = vmatprep.subr.bf16.mxu0 0
        %1370 = vmatpush1.bf16.msra.mxu0 %v1281
        %1371 = vmatprep.subr.bf16.mxu0 0
        %1372 = vmatpush1.bf16.msra.mxu0 0
        %1373 = vmatprep.subr.bf16.mxu0 0
        %1374 = vmatpush1.bf16.msra.mxu0 0
        %1375 = vmatprep.subr.bf16.mxu0 0
        %1376 = vmatpush1.bf16.msra.mxu0 0
        %1377 = vmatprep.subr.bf16.mxu0 0
        %1378 = vmatpush1.bf16.msra.mxu0 0
        %1379 = vmatprep.subr.bf16.mxu0 0
        %1380 = vmatpush1.bf16.msra.mxu0 0
        %1381 = vmatprep.subr.bf16.mxu0 0
        %1382 = vmatpush1.bf16.msra.mxu0 0
        %1383 = vmatprep.subr.bf16.mxu0 0
        %1384 = vmatpush1.bf16.msra.mxu0 0
        %1385 = vmatprep.subr.bf16.mxu0 0
        %1386 = vmatpush1.bf16.msra.mxu0 0
        %1387 = vmatprep.subr.bf16.mxu0 0
        %1388 = vmatpush1.bf16.msra.mxu0 0
        %1389 = vmatprep.subr.bf16.mxu0 0
        %1390 = vmatpush1.bf16.msra.mxu0 0
        %1391 = vmatprep.subr.bf16.mxu0 0
        %1392 = vmatpush1.bf16.msra.mxu0 0
        %1393 = vmatprep.subr.bf16.mxu0 0
        %1394 = vmatpush1.bf16.msra.mxu0 0
        %1395 = vmatprep.subr.bf16.mxu0 0
        %1396 = vmatpush1.bf16.msra.mxu0 0
        %1397 = vmatprep.subr.bf16.mxu0 0
        %1398 = vmatpush1.bf16.msra.mxu0 0
        %1399 = vmatprep.subr.bf16.mxu0 0
        %1400 = vmatpush1.bf16.msra.mxu0 0
        %1401 = vmatprep.mubr.bf16.mxu0 0
        %1402 = vmatmul.mubr.bf16.gmra.mrb[0].mxu0 %v698
        %v1403 = vpop.f32.mrb[0].mxu0
        %v1404 = vadd.f32 0.0, %v1403
        %v1405 = vpop.f32.mrb[0].mxu0
        %v1406 = vpop.f32.mrb[0].mxu0
        %v1407 = vadd.f32 0.0, %v1406
        %v1408 = vpop.f32.mrb[0].mxu0
        %1409 = vdwg.mxu0
        %1410 = vmatprep.subr.bf16.mxu0 0
        %1411 = vmatpush1.bf16.msra.mxu0 %v1282
        %1412 = vmatprep.subr.bf16.mxu0 0
        %1413 = vmatpush1.bf16.msra.mxu0 0
        %1414 = vmatprep.subr.bf16.mxu0 0
        %1415 = vmatpush1.bf16.msra.mxu0 0
        %1416 = vmatprep.subr.bf16.mxu0 0
        %1417 = vmatpush1.bf16.msra.mxu0 0
        %1418 = vmatprep.subr.bf16.mxu0 0
        %1419 = vmatpush1.bf16.msra.mxu0 0
        %1420 = vmatprep.subr.bf16.mxu0 0
        %1421 = vmatpush1.bf16.msra.mxu0 0
        %1422 = vmatprep.subr.bf16.mxu0 0
        %1423 = vmatpush1.bf16.msra.mxu0 0
        %1424 = vmatprep.subr.bf16.mxu0 0
        %1425 = vmatpush1.bf16.msra.mxu0 0
        %1426 = vmatprep.subr.bf16.mxu0 0
        %1427 = vmatpush1.bf16.msra.mxu0 0
        %1428 = vmatprep.subr.bf16.mxu0 0
        %1429 = vmatpush1.bf16.msra.mxu0 0
        %1430 = vmatprep.subr.bf16.mxu0 0
        %1431 = vmatpush1.bf16.msra.mxu0 0
        %1432 = vmatprep.subr.bf16.mxu0 0
        %1433 = vmatpush1.bf16.msra.mxu0 0
        %1434 = vmatprep.subr.bf16.mxu0 0
        %1435 = vmatpush1.bf16.msra.mxu0 0
        %1436 = vmatprep.subr.bf16.mxu0 0
        %1437 = vmatpush1.bf16.msra.mxu0 0
        %1438 = vmatprep.subr.bf16.mxu0 0
        %1439 = vmatpush1.bf16.msra.mxu0 0
        %1440 = vmatprep.subr.bf16.mxu0 0
        %1441 = vmatpush1.bf16.msra.mxu0 0
        %1442 = vmatprep.mubr.bf16.mxu0 0
        %1443 = vmatmul.mubr.bf16.gmra.mrb[0].mxu0 %v747
        %v1444 = vpop.f32.mrb[0].mxu0
        %v1445 = vadd.f32 0.0, %v1444
        %v1446 = vpop.f32.mrb[0].mxu0
        %v1447 = vpop.f32.mrb[0].mxu0
        %v1448 = vadd.f32 0.0, %v1447
        %v1449 = vpop.f32.mrb[0].mxu0
        %1450 = vdwg.mxu0
        %1451 = vmatprep.subr.bf16.mxu0 0
        %1452 = vmatpush1.bf16.msra.mxu0 %v1283
        %1453 = vmatprep.subr.bf16.mxu0 0
        %1454 = vmatpush1.bf16.msra.mxu0 0
        %1455 = vmatprep.subr.bf16.mxu0 0
        %1456 = vmatpush1.bf16.msra.mxu0 0
        %1457 = vmatprep.subr.bf16.mxu0 0
        %1458 = vmatpush1.bf16.msra.mxu0 0
        %1459 = vmatprep.subr.bf16.mxu0 0
        %1460 = vmatpush1.bf16.msra.mxu0 0
        %1461 = vmatprep.subr.bf16.mxu0 0
        %1462 = vmatpush1.bf16.msra.mxu0 0
        %1463 = vmatprep.subr.bf16.mxu0 0
        %1464 = vmatpush1.bf16.msra.mxu0 0
        %1465 = vmatprep.subr.bf16.mxu0 0
        %1466 = vmatpush1.bf16.msra.mxu0 0
        %1467 = vmatprep.subr.bf16.mxu0 0
        %1468 = vmatpush1.bf16.msra.mxu0 0
        %1469 = vmatprep.subr.bf16.mxu0 0
        %1470 = vmatpush1.bf16.msra.mxu0 0
        %1471 = vmatprep.subr.bf16.mxu0 0
        %1472 = vmatpush1.bf16.msra.mxu0 0
        %1473 = vmatprep.subr.bf16.mxu0 0
        %1474 = vmatpush1.bf16.msra.mxu0 0
        %1475 = vmatprep.subr.bf16.mxu0 0
        %1476 = vmatpush1.bf16.msra.mxu0 0
        %1477 = vmatprep.subr.bf16.mxu0 0
        %1478 = vmatpush1.bf16.msra.mxu0 0
        %1479 = vmatprep.subr.bf16.mxu0 0
        %1480 = vmatpush1.bf16.msra.mxu0 0
        %1481 = vmatprep.subr.bf16.mxu0 0
        %1482 = vmatpush1.bf16.msra.mxu0 0
        %1483 = vmatprep.mubr.bf16.mxu0 0
        %1484 = vmatmul.mubr.bf16.gmra.mrb[0].mxu0 %v796
        %v1485 = vpop.f32.mrb[0].mxu0
        %v1486 = vadd.f32 0.0, %v1485
        %v1487 = vpop.f32.mrb[0].mxu0
        %v1488 = vpop.f32.mrb[0].mxu0
        %v1489 = vadd.f32 0.0, %v1488
        %v1490 = vpop.f32.mrb[0].mxu0
        %1491 = vdwg.mxu0
        %1492 = vmatprep.subr.bf16.mxu0 0
        %1493 = vmatpush1.bf16.msra.mxu0 %v1284
        %1494 = vmatprep.subr.bf16.mxu0 0
        %1495 = vmatpush1.bf16.msra.mxu0 0
        %1496 = vmatprep.subr.bf16.mxu0 0
        %1497 = vmatpush1.bf16.msra.mxu0 0
        %1498 = vmatprep.subr.bf16.mxu0 0
        %1499 = vmatpush1.bf16.msra.mxu0 0
        %1500 = vmatprep.subr.bf16.mxu0 0
        %1501 = vmatpush1.bf16.msra.mxu0 0
        %1502 = vmatprep.subr.bf16.mxu0 0
        %1503 = vmatpush1.bf16.msra.mxu0 0
        %1504 = vmatprep.subr.bf16.mxu0 0
        %1505 = vmatpush1.bf16.msra.mxu0 0
        %1506 = vmatprep.subr.bf16.mxu0 0
        %1507 = vmatpush1.bf16.msra.mxu0 0
        %1508 = vmatprep.subr.bf16.mxu0 0
        %1509 = vmatpush1.bf16.msra.mxu0 0
        %1510 = vmatprep.subr.bf16.mxu0 0
        %1511 = vmatpush1.bf16.msra.mxu0 0
        %1512 = vmatprep.subr.bf16.mxu0 0
        %1513 = vmatpush1.bf16.msra.mxu0 0
        %1514 = vmatprep.subr.bf16.mxu0 0
        %1515 = vmatpush1.bf16.msra.mxu0 0
        %1516 = vmatprep.subr.bf16.mxu0 0
        %1517 = vmatpush1.bf16.msra.mxu0 0
        %1518 = vmatprep.subr.bf16.mxu0 0
        %1519 = vmatpush1.bf16.msra.mxu0 0
        %1520 = vmatprep.subr.bf16.mxu0 0
        %1521 = vmatpush1.bf16.msra.mxu0 0
        %1522 = vmatprep.subr.bf16.mxu0 0
        %1523 = vmatpush1.bf16.msra.mxu0 0
        %1524 = vmatprep.mubr.bf16.mxu0 0
        %1525 = vmatmul.mubr.bf16.gmra.mrb[0].mxu0 %v845
        %v1526 = vpop.f32.mrb[0].mxu0
        %v1527 = vadd.f32 0.0, %v1526
        %v1528 = vpop.f32.mrb[0].mxu0
        %v1529 = vpop.f32.mrb[0].mxu0
        %v1530 = vadd.f32 0.0, %v1529
        %v1531 = vpop.f32.mrb[0].mxu0
        %1532 = vdwg.mxu0
        %1533 = vmatprep.subr.bf16.mxu0 0
        %1534 = vmatpush1.bf16.msra.mxu0 %v1285
        %1535 = vmatprep.subr.bf16.mxu0 0
        %1536 = vmatpush1.bf16.msra.mxu0 0
        %1537 = vmatprep.subr.bf16.mxu0 0
        %1538 = vmatpush1.bf16.msra.mxu0 0
        %1539 = vmatprep.subr.bf16.mxu0 0
        %1540 = vmatpush1.bf16.msra.mxu0 0
        %1541 = vmatprep.subr.bf16.mxu0 0
        %1542 = vmatpush1.bf16.msra.mxu0 0
        %1543 = vmatprep.subr.bf16.mxu0 0
        %1544 = vmatpush1.bf16.msra.mxu0 0
        %1545 = vmatprep.subr.bf16.mxu0 0
        %1546 = vmatpush1.bf16.msra.mxu0 0
        %1547 = vmatprep.subr.bf16.mxu0 0
        %1548 = vmatpush1.bf16.msra.mxu0 0
        %1549 = vmatprep.subr.bf16.mxu0 0
        %1550 = vmatpush1.bf16.msra.mxu0 0
        %1551 = vmatprep.subr.bf16.mxu0 0
        %1552 = vmatpush1.bf16.msra.mxu0 0
        %1553 = vmatprep.subr.bf16.mxu0 0
        %1554 = vmatpush1.bf16.msra.mxu0 0
        %1555 = vmatprep.subr.bf16.mxu0 0
        %1556 = vmatpush1.bf16.msra.mxu0 0
        %1557 = vmatprep.subr.bf16.mxu0 0
        %1558 = vmatpush1.bf16.msra.mxu0 0
        %1559 = vmatprep.subr.bf16.mxu0 0
        %1560 = vmatpush1.bf16.msra.mxu0 0
        %1561 = vmatprep.subr.bf16.mxu0 0
        %1562 = vmatpush1.bf16.msra.mxu0 0
        %1563 = vmatprep.subr.bf16.mxu0 0
        %1564 = vmatpush1.bf16.msra.mxu0 0
        %1565 = vmatprep.mubr.bf16.mxu0 0
        %1566 = vmatmul.mubr.bf16.gmra.mrb[0].mxu0 %v894
        %v1567 = vpop.f32.mrb[0].mxu0
        %v1568 = vadd.f32 0.0, %v1567
        %v1569 = vpop.f32.mrb[0].mxu0
        %v1570 = vpop.f32.mrb[0].mxu0
        %v1571 = vadd.f32 0.0, %v1570
        %v1572 = vpop.f32.mrb[0].mxu0
        %1573 = vdwg.mxu0
        %1574 = vmatprep.subr.bf16.mxu0 0
        %1575 = vmatpush1.bf16.msra.mxu0 %v1286
        %1576 = vmatprep.subr.bf16.mxu0 0
        %1577 = vmatpush1.bf16.msra.mxu0 0
        %1578 = vmatprep.subr.bf16.mxu0 0
        %1579 = vmatpush1.bf16.msra.mxu0 0
        %1580 = vmatprep.subr.bf16.mxu0 0
        %1581 = vmatpush1.bf16.msra.mxu0 0
        %1582 = vmatprep.subr.bf16.mxu0 0
        %1583 = vmatpush1.bf16.msra.mxu0 0
        %1584 = vmatprep.subr.bf16.mxu0 0
        %1585 = vmatpush1.bf16.msra.mxu0 0
        %1586 = vmatprep.subr.bf16.mxu0 0
        %1587 = vmatpush1.bf16.msra.mxu0 0
        %1588 = vmatprep.subr.bf16.mxu0 0
        %1589 = vmatpush1.bf16.msra.mxu0 0
        %1590 = vmatprep.subr.bf16.mxu0 0
        %1591 = vmatpush1.bf16.msra.mxu0 0
        %1592 = vmatprep.subr.bf16.mxu0 0
        %1593 = vmatpush1.bf16.msra.mxu0 0
        %1594 = vmatprep.subr.bf16.mxu0 0
        %1595 = vmatpush1.bf16.msra.mxu0 0
        %1596 = vmatprep.subr.bf16.mxu0 0
        %1597 = vmatpush1.bf16.msra.mxu0 0
        %1598 = vmatprep.subr.bf16.mxu0 0
        %1599 = vmatpush1.bf16.msra.mxu0 0
        %1600 = vmatprep.subr.bf16.mxu0 0
        %1601 = vmatpush1.bf16.msra.mxu0 0
        %1602 = vmatprep.subr.bf16.mxu0 0
        %1603 = vmatpush1.bf16.msra.mxu0 0
        %1604 = vmatprep.subr.bf16.mxu0 0
        %1605 = vmatpush1.bf16.msra.mxu0 0
        %1606 = vmatprep.mubr.bf16.mxu0 0
        %1607 = vmatmul.mubr.bf16.gmra.mrb[0].mxu0 %v943
        %v1608 = vpop.f32.mrb[0].mxu0
        %v1609 = vadd.f32 0.0, %v1608
        %v1610 = vpop.f32.mrb[0].mxu0
        %v1611 = vpop.f32.mrb[0].mxu0
        %v1612 = vadd.f32 0.0, %v1611
        %v1613 = vpop.f32.mrb[0].mxu0
        %1614 = vdwg.mxu0
        %v1615 = vlaneseq
        %v1616 = vshrl.u32 %v1615, 7
        %v1617 = vsub.s32 0, %v1616
        %v1618 = vrot.slane %v413, %v1617
        %v1619 = vadd.f32 %v1322, %v1618
        %v1620 = vadd.f32 %v1325, %v1618
        %v1621 = vadd.f32 %v1363, %v1618
        %v1622 = vadd.f32 %v1366, %v1618
        %v1623 = vadd.f32 %v1404, %v1618
        %v1624 = vadd.f32 %v1407, %v1618
        %v1625 = vadd.f32 %v1445, %v1618
        %v1626 = vadd.f32 %v1448, %v1618
        %v1627 = vadd.f32 %v1486, %v1618
        %v1628 = vadd.f32 %v1489, %v1618
        %v1629 = vadd.f32 %v1527, %v1618
        %v1630 = vadd.f32 %v1530, %v1618
        %v1631 = vadd.f32 %v1568, %v1618
        %v1632 = vadd.f32 %v1571, %v1618
        %v1633 = vadd.f32 %v1609, %v1618
        %v1634 = vadd.f32 %v1612, %v1618
        %v1635 = vmax.f32 %v1619, 0.0
        %v1636 = vmax.f32 %v1620, 0.0
        %v1637 = vmax.f32 %v1621, 0.0
        %v1638 = vmax.f32 %v1622, 0.0
        %v1639 = vmax.f32 %v1623, 0.0
        %v1640 = vmax.f32 %v1624, 0.0
        %v1641 = vmax.f32 %v1625, 0.0
        %v1642 = vmax.f32 %v1626, 0.0
        %v1643 = vmax.f32 %v1627, 0.0
        %v1644 = vmax.f32 %v1628, 0.0
        %v1645 = vmax.f32 %v1629, 0.0
        %v1646 = vmax.f32 %v1630, 0.0
        %v1647 = vmax.f32 %v1631, 0.0
        %v1648 = vmax.f32 %v1632, 0.0
        %v1649 = vmax.f32 %v1633, 0.0
        %v1650 = vmax.f32 %v1634, 0.0
        %v1651 = vlaneseq
        %v1652 = vshrl.u32 %v1651, 7
        %v1653 = vsub.s32 0, %v1652
        %v1654 = vrot.slane %v414, %v1653
        %v1655 = vmul.f32 %v1635, %v1654
        %v1656 = vmul.f32 %v1636, %v1654
        %v1657 = vmul.f32 %v1637, %v1654
        %v1658 = vmul.f32 %v1638, %v1654
        %v1659 = vmul.f32 %v1639, %v1654
        %v1660 = vmul.f32 %v1640, %v1654
        %v1661 = vmul.f32 %v1641, %v1654
        %v1662 = vmul.f32 %v1642, %v1654
        %v1663 = vmul.f32 %v1643, %v1654
        %v1664 = vmul.f32 %v1644, %v1654
        %v1665 = vmul.f32 %v1645, %v1654
        %v1666 = vmul.f32 %v1646, %v1654
        %v1667 = vmul.f32 %v1647, %v1654
        %v1668 = vmul.f32 %v1648, %v1654
        %v1669 = vmul.f32 %v1649, %v1654
        %v1670 = vmul.f32 %v1650, %v1654
        %v1671 = vlaneseq
        %v1672 = vshrl.u32 %v1671, 7
        %v1673 = vsub.s32 0, %v1672
        %v1674 = vrot.slane %v415, %v1673
        %v1675 = vadd.f32 %v1655, %v1674
        %v1676 = vadd.f32 %v1656, %v1674
        %v1677 = vadd.f32 %v1657, %v1674
        %v1678 = vadd.f32 %v1658, %v1674
        %v1679 = vadd.f32 %v1659, %v1674
        %v1680 = vadd.f32 %v1660, %v1674
        %v1681 = vadd.f32 %v1661, %v1674
        %v1682 = vadd.f32 %v1662, %v1674
        %v1683 = vadd.f32 %v1663, %v1674
        %v1684 = vadd.f32 %v1664, %v1674
        %v1685 = vadd.f32 %v1665, %v1674
        %v1686 = vadd.f32 %v1666, %v1674
        %v1687 = vadd.f32 %v1667, %v1674
        %v1688 = vadd.f32 %v1668, %v1674
        %v1689 = vadd.f32 %v1669, %v1674
        %v1690 = vadd.f32 %v1670, %v1674
        %v1691 = vpack.c.bf16 %v1676, %v1675
        %v1692 = vpack.c.bf16 %v1678, %v1677
        %v1693 = vpack.c.bf16 %v1680, %v1679
        %v1694 = vpack.c.bf16 %v1682, %v1681
        %v1695 = vpack.c.bf16 %v1684, %v1683
        %v1696 = vpack.c.bf16 %v1686, %v1685
        %v1697 = vpack.c.bf16 %v1688, %v1687
        %v1698 = vpack.c.bf16 %v1690, %v1689
        %v1699 = vld [vmem:[%s4] sm:$0xf]
        %v1701 = vsel %vm484, %v1699, 0
        %1703 = vmatprep.subr.bf16.mxu0 0
        %1704 = vmatpush1.bf16.msra.mxu0 %v1701
        %1705 = vmatprep.subr.bf16.mxu0 0
        %1706 = vmatpush1.bf16.msra.mxu0 0
        %1707 = vmatprep.subr.bf16.mxu0 0
        %1708 = vmatpush1.bf16.msra.mxu0 0
        %1709 = vmatprep.subr.bf16.mxu0 0
        %1710 = vmatpush1.bf16.msra.mxu0 0
        %1711 = vmatprep.subr.bf16.mxu0 0
        %1712 = vmatpush1.bf16.msra.mxu0 0
        %1713 = vmatprep.subr.bf16.mxu0 0
        %1714 = vmatpush1.bf16.msra.mxu0 0
        %1715 = vmatprep.subr.bf16.mxu0 0
        %1716 = vmatpush1.bf16.msra.mxu0 0
        %1717 = vmatprep.subr.bf16.mxu0 0
        %1718 = vmatpush1.bf16.msra.mxu0 0
        %1719 = vmatprep.subr.bf16.mxu0 0
        %1720 = vmatpush1.bf16.msra.mxu0 0
        %1721 = vmatprep.subr.bf16.mxu0 0
        %1722 = vmatpush1.bf16.msra.mxu0 0
        %1723 = vmatprep.subr.bf16.mxu0 0
        %1724 = vmatpush1.bf16.msra.mxu0 0
        %1725 = vmatprep.subr.bf16.mxu0 0
        %1726 = vmatpush1.bf16.msra.mxu0 0
        %1727 = vmatprep.subr.bf16.mxu0 0
        %1728 = vmatpush1.bf16.msra.mxu0 0
        %1729 = vmatprep.subr.bf16.mxu0 0
        %1730 = vmatpush1.bf16.msra.mxu0 0
        %1731 = vmatprep.subr.bf16.mxu0 0
        %1732 = vmatpush1.bf16.msra.mxu0 0
        %1733 = vmatprep.subr.bf16.mxu0 0
        %1734 = vmatpush1.bf16.msra.mxu0 0
        %1735 = vmatprep.mubr.bf16.mxu0 0
        %1736 = vmatmul.mubr.bf16.gmra.mrb[0].mxu0 %v461
        %v1737 = vpop.f32.mrb[0].mxu0
        %v1738 = vadd.f32 %v1203, %v1737
        %v1739 = vpop.f32.mrb[0].mxu0
        %v1740 = vpop.f32.mrb[0].mxu0
        %v1741 = vadd.f32 %v1207, %v1740
        %v1742 = vpop.f32.mrb[0].mxu0
        %1743 = vmatprep.mubr.bf16.mxu0 0
        %1744 = vmatmul.mubr.bf16.gmra.mrb[0].mxu0 %v464
        %v1745 = vpop.f32.mrb[0].mxu0
        %v1746 = vadd.f32 %v1213, %v1745
        %v1747 = vpop.f32.mrb[0].mxu0
        %v1748 = vpop.f32.mrb[0].mxu0
        %v1749 = vadd.f32 %v1217, %v1748
        %v1750 = vpop.f32.mrb[0].mxu0
        %1751 = vmatprep.mubr.bf16.mxu0 0
        %1752 = vmatmul.mubr.bf16.gmra.mrb[0].mxu0 %v467
        %v1753 = vpop.f32.mrb[0].mxu0
        %v1754 = vadd.f32 %v1223, %v1753
        %v1755 = vpop.f32.mrb[0].mxu0
        %v1756 = vpop.f32.mrb[0].mxu0
        %v1757 = vadd.f32 %v1227, %v1756
        %v1758 = vpop.f32.mrb[0].mxu0
        %1759 = vmatprep.mubr.bf16.mxu0 0
        %1760 = vmatmul.mubr.bf16.gmra.mrb[0].mxu0 %v470
        %v1761 = vpop.f32.mrb[0].mxu0
        %v1762 = vadd.f32 %v1233, %v1761
        %v1763 = vpop.f32.mrb[0].mxu0
        %v1764 = vpop.f32.mrb[0].mxu0
        %v1765 = vadd.f32 %v1237, %v1764
        %v1766 = vpop.f32.mrb[0].mxu0
        %1767 = vmatprep.mubr.bf16.mxu0 0
        %1768 = vmatmul.mubr.bf16.gmra.mrb[0].mxu0 %v473
        %v1769 = vpop.f32.mrb[0].mxu0
        %v1770 = vadd.f32 %v1243, %v1769
        %v1771 = vpop.f32.mrb[0].mxu0
        %v1772 = vpop.f32.mrb[0].mxu0
        %v1773 = vadd.f32 %v1247, %v1772
        %v1774 = vpop.f32.mrb[0].mxu0
        %1775 = vmatprep.mubr.bf16.mxu0 0
        %1776 = vmatmul.mubr.bf16.gmra.mrb[0].mxu0 %v476
        %v1777 = vpop.f32.mrb[0].mxu0
        %v1778 = vadd.f32 %v1253, %v1777
        %v1779 = vpop.f32.mrb[0].mxu0
        %v1780 = vpop.f32.mrb[0].mxu0
        %v1781 = vadd.f32 %v1257, %v1780
        %v1782 = vpop.f32.mrb[0].mxu0
        %1783 = vmatprep.mubr.bf16.mxu0 0
        %1784 = vmatmul.mubr.bf16.gmra.mrb[0].mxu0 %v479
        %v1785 = vpop.f32.mrb[0].mxu0
        %v1786 = vadd.f32 %v1263, %v1785
        %v1787 = vpop.f32.mrb[0].mxu0
        %v1788 = vpop.f32.mrb[0].mxu0
        %v1789 = vadd.f32 %v1267, %v1788
        %v1790 = vpop.f32.mrb[0].mxu0
        %1791 = vmatprep.mubr.bf16.mxu0 0
        %1792 = vmatmul.mubr.bf16.gmra.mrb[0].mxu0 %v482
        %v1793 = vpop.f32.mrb[0].mxu0
        %v1794 = vadd.f32 %v1273, %v1793
        %v1795 = vpop.f32.mrb[0].mxu0
        %v1796 = vpop.f32.mrb[0].mxu0
        %v1797 = vadd.f32 %v1277, %v1796
        %v1798 = vpop.f32.mrb[0].mxu0
        %1799 = vdwg.mxu0
        %v1800 = vld [vmem:[%s5] sm:$0xf]
        %v1801 = vld [vmem:[%s5 + $0x4] sm:$0xf]
        %v1802 = vld [vmem:[%s5 + $0x8] sm:$0xf]
        %v1803 = vld [vmem:[%s5 + $0xc] sm:$0xf]
        %v1804 = vld [vmem:[%s5 + $0x10] sm:$0xf]
        %v1805 = vld [vmem:[%s5 + $0x14] sm:$0xf]
        %v1806 = vld [vmem:[%s5 + $0x18] sm:$0xf]
        %v1807 = vld [vmem:[%s5 + $0x1c] sm:$0xf]
        %v1808 = vld [vmem:[%s5 + $0x20] sm:$0xf]
        %v1809 = vld [vmem:[%s5 + $0x24] sm:$0xf]
        %v1810 = vld [vmem:[%s5 + $0x28] sm:$0xf]
        %v1811 = vld [vmem:[%s5 + $0x2c] sm:$0xf]
        %v1812 = vld [vmem:[%s5 + $0x30] sm:$0xf]
        %v1813 = vld [vmem:[%s5 + $0x34] sm:$0xf]
        %v1814 = vld [vmem:[%s5 + $0x38] sm:$0xf]
        %v1815 = vld [vmem:[%s5 + $0x3c] sm:$0xf]
        %v1832 = vunpack.c.l.b16 %v1800
        %v1833 = vunpack.c.l.b16 %v1801
        %v1834 = vunpack.c.l.b16 %v1802
        %v1835 = vunpack.c.l.b16 %v1803
        %v1836 = vunpack.c.l.b16 %v1804
        %v1837 = vunpack.c.l.b16 %v1805
        %v1838 = vunpack.c.l.b16 %v1806
        %v1839 = vunpack.c.l.b16 %v1807
        %v1840 = vunpack.c.l.b16 %v1808
        %v1841 = vunpack.c.l.b16 %v1809
        %v1842 = vunpack.c.l.b16 %v1810
        %v1843 = vunpack.c.l.b16 %v1811
        %v1844 = vunpack.c.l.b16 %v1812
        %v1845 = vunpack.c.l.b16 %v1813
        %v1846 = vunpack.c.l.b16 %v1814
        %v1847 = vunpack.c.l.b16 %v1815
        %v1848 = vpack.c.b16 %v1833, %v1832
        %v1849 = vpack.c.b16 %v1835, %v1834
        %v1850 = vpack.c.b16 %v1837, %v1836
        %v1851 = vpack.c.b16 %v1839, %v1838
        %v1852 = vpack.c.b16 %v1841, %v1840
        %v1853 = vpack.c.b16 %v1843, %v1842
        %v1854 = vpack.c.b16 %v1845, %v1844
        %v1855 = vpack.c.b16 %v1847, %v1846
        %1864 = vmatprep.subr.bf16.mxu0 0
        %1865 = vmatpush1.bf16.msra.mxu0 %v1848
        %1866 = vmatprep.subr.bf16.mxu0 0
        %1867 = vmatpush1.bf16.msra.mxu0 %v1849
        %1868 = vmatprep.subr.bf16.mxu0 0
        %1869 = vmatpush1.bf16.msra.mxu0 %v1850
        %1870 = vmatprep.subr.bf16.mxu0 0
        %1871 = vmatpush1.bf16.msra.mxu0 %v1851
        %1872 = vmatprep.subr.bf16.mxu0 0
        %1873 = vmatpush1.bf16.msra.mxu0 %v1852
        %1874 = vmatprep.subr.bf16.mxu0 0
        %1875 = vmatpush1.bf16.msra.mxu0 %v1853
        %1876 = vmatprep.subr.bf16.mxu0 0
        %1877 = vmatpush1.bf16.msra.mxu0 %v1854
        %1878 = vmatprep.subr.bf16.mxu0 0
        %1879 = vmatpush1.bf16.msra.mxu0 %v1855
        %1880 = vmatprep.subr.bf16.mxu0 0
        %1881 = vmatpush1.bf16.msra.mxu0 0
        %1882 = vmatprep.subr.bf16.mxu0 0
        %1883 = vmatpush1.bf16.msra.mxu0 0
        %1884 = vmatprep.subr.bf16.mxu0 0
        %1885 = vmatpush1.bf16.msra.mxu0 0
        %1886 = vmatprep.subr.bf16.mxu0 0
        %1887 = vmatpush1.bf16.msra.mxu0 0
        %1888 = vmatprep.subr.bf16.mxu0 0
        %1889 = vmatpush1.bf16.msra.mxu0 0
        %1890 = vmatprep.subr.bf16.mxu0 0
        %1891 = vmatpush1.bf16.msra.mxu0 0
        %1892 = vmatprep.subr.bf16.mxu0 0
        %1893 = vmatpush1.bf16.msra.mxu0 0
        %1894 = vmatprep.subr.bf16.mxu0 0
        %1895 = vmatpush1.bf16.msra.mxu0 0
        %1896 = vmatprep.mubr.bf16.mxu0 0
        %1897 = vmatmul.mubr.bf16.gmra.mrb[0].mxu0 %v1691
        %v1898 = vpop.f32.mrb[0].mxu0
        %v1899 = vadd.f32 0.0, %v1898
        %v1900 = vpop.f32.mrb[0].mxu0
        %v1901 = vpop.f32.mrb[0].mxu0
        %v1902 = vadd.f32 0.0, %v1901
        %v1903 = vpop.f32.mrb[0].mxu0
        %1904 = vmatprep.mubr.bf16.mxu0 0
        %1905 = vmatmul.mubr.bf16.gmra.mrb[0].mxu0 %v1692
        %v1906 = vpop.f32.mrb[0].mxu0
        %v1907 = vadd.f32 0.0, %v1906
        %v1908 = vpop.f32.mrb[0].mxu0
        %v1909 = vpop.f32.mrb[0].mxu0
        %v1910 = vadd.f32 0.0, %v1909
        %v1911 = vpop.f32.mrb[0].mxu0
        %1912 = vmatprep.mubr.bf16.mxu0 0
        %1913 = vmatmul.mubr.bf16.gmra.mrb[0].mxu0 %v1693
        %v1914 = vpop.f32.mrb[0].mxu0
        %v1915 = vadd.f32 0.0, %v1914
        %v1916 = vpop.f32.mrb[0].mxu0
        %v1917 = vpop.f32.mrb[0].mxu0
        %v1918 = vadd.f32 0.0, %v1917
        %v1919 = vpop.f32.mrb[0].mxu0
        %1920 = vmatprep.mubr.bf16.mxu0 0
        %1921 = vmatmul.mubr.bf16.gmra.mrb[0].mxu0 %v1694
        %v1922 = vpop.f32.mrb[0].mxu0
        %v1923 = vadd.f32 0.0, %v1922
        %v1924 = vpop.f32.mrb[0].mxu0
        %v1925 = vpop.f32.mrb[0].mxu0
        %v1926 = vadd.f32 0.0, %v1925
        %v1927 = vpop.f32.mrb[0].mxu0
        %1928 = vmatprep.mubr.bf16.mxu0 0
        %1929 = vmatmul.mubr.bf16.gmra.mrb[0].mxu0 %v1695
        %v1930 = vpop.f32.mrb[0].mxu0
        %v1931 = vadd.f32 0.0, %v1930
        %v1932 = vpop.f32.mrb[0].mxu0
        %v1933 = vpop.f32.mrb[0].mxu0
        %v1934 = vadd.f32 0.0, %v1933
        %v1935 = vpop.f32.mrb[0].mxu0
        %1936 = vmatprep.mubr.bf16.mxu0 0
        %1937 = vmatmul.mubr.bf16.gmra.mrb[0].mxu0 %v1696
        %v1938 = vpop.f32.mrb[0].mxu0
        %v1939 = vadd.f32 0.0, %v1938
        %v1940 = vpop.f32.mrb[0].mxu0
        %v1941 = vpop.f32.mrb[0].mxu0
        %v1942 = vadd.f32 0.0, %v1941
        %v1943 = vpop.f32.mrb[0].mxu0
        %1944 = vmatprep.mubr.bf16.mxu0 0
        %1945 = vmatmul.mubr.bf16.gmra.mrb[0].mxu0 %v1697
        %v1946 = vpop.f32.mrb[0].mxu0
        %v1947 = vadd.f32 0.0, %v1946
        %v1948 = vpop.f32.mrb[0].mxu0
        %v1949 = vpop.f32.mrb[0].mxu0
        %v1950 = vadd.f32 0.0, %v1949
        %v1951 = vpop.f32.mrb[0].mxu0
        %1952 = vmatprep.mubr.bf16.mxu0 0
        %1953 = vmatmul.mubr.bf16.gmra.mrb[0].mxu0 %v1698
        %v1954 = vpop.f32.mrb[0].mxu0
        %v1955 = vadd.f32 0.0, %v1954
        %v1956 = vpop.f32.mrb[0].mxu0
        %v1957 = vpop.f32.mrb[0].mxu0
        %v1958 = vadd.f32 0.0, %v1957
        %v1959 = vpop.f32.mrb[0].mxu0
        %1960 = vdwg.mxu0
        %v1961 = vadd.f32 %v1738, %v1899
        %v1962 = vadd.f32 %v1741, %v1902
        %v1963 = vadd.f32 %v1746, %v1907
        %v1964 = vadd.f32 %v1749, %v1910
        %v1965 = vadd.f32 %v1754, %v1915
        %v1966 = vadd.f32 %v1757, %v1918
        %v1967 = vadd.f32 %v1762, %v1923
        %v1968 = vadd.f32 %v1765, %v1926
        %v1969 = vadd.f32 %v1770, %v1931
        %v1970 = vadd.f32 %v1773, %v1934
        %v1971 = vadd.f32 %v1778, %v1939
        %v1972 = vadd.f32 %v1781, %v1942
        %v1973 = vadd.f32 %v1786, %v1947
        %v1974 = vadd.f32 %v1789, %v1950
        %v1975 = vadd.f32 %v1794, %v1955
        %v1976 = vadd.f32 %v1797, %v1958
        %v1977 = vlaneseq
        %v1978 = vshrl.u32 %v1977, 7
        %v1979 = vsub.s32 0, %v1978
        %v1980 = vrot.slane %v416, %v1979
        %v1981 = vadd.f32 %v1961, %v1980
        %v1982 = vadd.f32 %v1962, %v1980
        %v1983 = vadd.f32 %v1963, %v1980
        %v1984 = vadd.f32 %v1964, %v1980
        %v1985 = vadd.f32 %v1965, %v1980
        %v1986 = vadd.f32 %v1966, %v1980
        %v1987 = vadd.f32 %v1967, %v1980
        %v1988 = vadd.f32 %v1968, %v1980
        %v1989 = vadd.f32 %v1969, %v1980
        %v1990 = vadd.f32 %v1970, %v1980
        %v1991 = vadd.f32 %v1971, %v1980
        %v1992 = vadd.f32 %v1972, %v1980
        %v1993 = vadd.f32 %v1973, %v1980
        %v1994 = vadd.f32 %v1974, %v1980
        %v1995 = vadd.f32 %v1975, %v1980
        %v1996 = vadd.f32 %v1976, %v1980
        %v1997 = vmax.f32 %v1981, 0.0
        %v1998 = vmax.f32 %v1982, 0.0
        %v1999 = vmax.f32 %v1983, 0.0
        %v2000 = vmax.f32 %v1984, 0.0
        %v2001 = vmax.f32 %v1985, 0.0
        %v2002 = vmax.f32 %v1986, 0.0
        %v2003 = vmax.f32 %v1987, 0.0
        %v2004 = vmax.f32 %v1988, 0.0
        %v2005 = vmax.f32 %v1989, 0.0
        %v2006 = vmax.f32 %v1990, 0.0
        %v2007 = vmax.f32 %v1991, 0.0
        %v2008 = vmax.f32 %v1992, 0.0
        %v2009 = vmax.f32 %v1993, 0.0
        %v2010 = vmax.f32 %v1994, 0.0
        %v2011 = vmax.f32 %v1995, 0.0
        %v2012 = vmax.f32 %v1996, 0.0
        %v2013 = vpack.c.bf16 %v1998, %v1997
        %v2014 = vpack.c.bf16 %v2000, %v1999
        %v2015 = vpack.c.bf16 %v2002, %v2001
        %v2016 = vpack.c.bf16 %v2004, %v2003
        %v2017 = vpack.c.bf16 %v2006, %v2005
        %v2018 = vpack.c.bf16 %v2008, %v2007
        %v2019 = vpack.c.bf16 %v2010, %v2009
        %v2020 = vpack.c.bf16 %v2012, %v2011
        %v2021 = vld [vmem:[#allocation7] sm:$0xf]
        %v2022 = vld [vmem:[#allocation7 + $0x4] sm:$0xf]
        %v2023 = vld [vmem:[#allocation7 + $0x8] sm:$0xf]
        %v2024 = vld [vmem:[#allocation7 + $0xc] sm:$0xf]
        %v2025 = vld [vmem:[#allocation7 + $0x10] sm:$0xf]
        %v2026 = vld [vmem:[#allocation7 + $0x14] sm:$0xf]
        %v2027 = vld [vmem:[#allocation7 + $0x18] sm:$0xf]
        %v2028 = vld [vmem:[#allocation7 + $0x1c] sm:$0xf]
        %v2029 = vld [vmem:[#allocation7 + $0x20] sm:$0xf]
        %v2030 = vld [vmem:[#allocation7 + $0x24] sm:$0xf]
        %v2031 = vld [vmem:[#allocation7 + $0x28] sm:$0xf]
        %v2032 = vld [vmem:[#allocation7 + $0x2c] sm:$0xf]
        %v2033 = vld [vmem:[#allocation7 + $0x30] sm:$0xf]
        %v2034 = vld [vmem:[#allocation7 + $0x34] sm:$0xf]
        %v2035 = vld [vmem:[#allocation7 + $0x38] sm:$0xf]
        %v2036 = vld [vmem:[#allocation7 + $0x3c] sm:$0xf]
        %v2037 = vlaneseq
        %v2038 = vshrl.u32 %v2037, 7
        %v2039 = vsub.s32 0, %v2038
        %v2040 = vrot.slane %v417, %v2039
        %v2057 = vunpack.c.l.b16 %v2021
        %v2058 = vunpack.c.l.b16 %v2022
        %v2059 = vunpack.c.l.b16 %v2023
        %v2060 = vunpack.c.l.b16 %v2024
        %v2061 = vunpack.c.l.b16 %v2025
        %v2062 = vunpack.c.l.b16 %v2026
        %v2063 = vunpack.c.l.b16 %v2027
        %v2064 = vunpack.c.l.b16 %v2028
        %v2065 = vunpack.c.l.b16 %v2029
        %v2066 = vunpack.c.l.b16 %v2030
        %v2067 = vunpack.c.l.b16 %v2031
        %v2068 = vunpack.c.l.b16 %v2032
        %v2069 = vunpack.c.l.b16 %v2033
        %v2070 = vunpack.c.l.b16 %v2034
        %v2071 = vunpack.c.l.b16 %v2035
        %v2072 = vunpack.c.l.b16 %v2036
        %v2073 = vpack.c.b16 %v2058, %v2057
        %v2074 = vpack.c.b16 %v2060, %v2059
        %v2075 = vpack.c.b16 %v2062, %v2061
        %v2076 = vpack.c.b16 %v2064, %v2063
        %v2077 = vpack.c.b16 %v2066, %v2065
        %v2078 = vpack.c.b16 %v2068, %v2067
        %v2079 = vpack.c.b16 %v2070, %v2069
        %v2080 = vpack.c.b16 %v2072, %v2071
        %2089 = vmatprep.subr.bf16.mxu0 0
        %2090 = vmatpush1.bf16.msra.mxu0 %v2073
        %2091 = vmatprep.subr.bf16.mxu0 0
        %2092 = vmatpush1.bf16.msra.mxu0 %v2074
        %2093 = vmatprep.subr.bf16.mxu0 0
        %2094 = vmatpush1.bf16.msra.mxu0 %v2075
        %2095 = vmatprep.subr.bf16.mxu0 0
        %2096 = vmatpush1.bf16.msra.mxu0 %v2076
        %2097 = vmatprep.subr.bf16.mxu0 0
        %2098 = vmatpush1.bf16.msra.mxu0 %v2077
        %2099 = vmatprep.subr.bf16.mxu0 0
        %2100 = vmatpush1.bf16.msra.mxu0 %v2078
        %2101 = vmatprep.subr.bf16.mxu0 0
        %2102 = vmatpush1.bf16.msra.mxu0 %v2079
        %2103 = vmatprep.subr.bf16.mxu0 0
        %2104 = vmatpush1.bf16.msra.mxu0 %v2080
        %2105 = vmatprep.subr.bf16.mxu0 0
        %2106 = vmatpush1.bf16.msra.mxu0 0
        %2107 = vmatprep.subr.bf16.mxu0 0
        %2108 = vmatpush1.bf16.msra.mxu0 0
        %2109 = vmatprep.subr.bf16.mxu0 0
        %2110 = vmatpush1.bf16.msra.mxu0 0
        %2111 = vmatprep.subr.bf16.mxu0 0
        %2112 = vmatpush1.bf16.msra.mxu0 0
        %2113 = vmatprep.subr.bf16.mxu0 0
        %2114 = vmatpush1.bf16.msra.mxu0 0
        %2115 = vmatprep.subr.bf16.mxu0 0
        %2116 = vmatpush1.bf16.msra.mxu0 0
        %2117 = vmatprep.subr.bf16.mxu0 0
        %2118 = vmatpush1.bf16.msra.mxu0 0
        %2119 = vmatprep.subr.bf16.mxu0 0
        %2120 = vmatpush1.bf16.msra.mxu0 0
        %2121 = vmatprep.mubr.bf16.mxu0 0
        %2122 = vmatmul.mubr.bf16.gmra.mrb[0].mxu0 %v2013
        %v2123 = vpop.f32.mrb[0].mxu0
        %v2124 = vadd.f32 %v2040, %v2123
        %v2125 = vpop.f32.mrb[0].mxu0
        %v2126 = vpop.f32.mrb[0].mxu0
        %v2127 = vadd.f32 %v2040, %v2126
        %v2128 = vpop.f32.mrb[0].mxu0
        %2129 = vmatprep.mubr.bf16.mxu0 0
        %2130 = vmatmul.mubr.bf16.gmra.mrb[0].mxu0 %v2014
        %v2131 = vpop.f32.mrb[0].mxu0
        %v2132 = vadd.f32 %v2040, %v2131
        %v2133 = vpop.f32.mrb[0].mxu0
        %v2134 = vpop.f32.mrb[0].mxu0
        %v2135 = vadd.f32 %v2040, %v2134
        %v2136 = vpop.f32.mrb[0].mxu0
        %2137 = vmatprep.mubr.bf16.mxu0 0
        %2138 = vmatmul.mubr.bf16.gmra.mrb[0].mxu0 %v2015
        %v2139 = vpop.f32.mrb[0].mxu0
        %v2140 = vadd.f32 %v2040, %v2139
        %v2141 = vpop.f32.mrb[0].mxu0
        %v2142 = vpop.f32.mrb[0].mxu0
        %v2143 = vadd.f32 %v2040, %v2142
        %v2144 = vpop.f32.mrb[0].mxu0
        %2145 = vmatprep.mubr.bf16.mxu0 0
        %2146 = vmatmul.mubr.bf16.gmra.mrb[0].mxu0 %v2016
        %v2147 = vpop.f32.mrb[0].mxu0
        %v2148 = vadd.f32 %v2040, %v2147
        %v2149 = vpop.f32.mrb[0].mxu0
        %v2150 = vpop.f32.mrb[0].mxu0
        %v2151 = vadd.f32 %v2040, %v2150
        %v2152 = vpop.f32.mrb[0].mxu0
        %2153 = vmatprep.mubr.bf16.mxu0 0
        %2154 = vmatmul.mubr.bf16.gmra.mrb[0].mxu0 %v2017
        %v2155 = vpop.f32.mrb[0].mxu0
        %v2156 = vadd.f32 %v2040, %v2155
        %v2157 = vpop.f32.mrb[0].mxu0
        %v2158 = vpop.f32.mrb[0].mxu0
        %v2159 = vadd.f32 %v2040, %v2158
        %v2160 = vpop.f32.mrb[0].mxu0
        %2161 = vmatprep.mubr.bf16.mxu0 0
        %2162 = vmatmul.mubr.bf16.gmra.mrb[0].mxu0 %v2018
        %v2163 = vpop.f32.mrb[0].mxu0
        %v2164 = vadd.f32 %v2040, %v2163
        %v2165 = vpop.f32.mrb[0].mxu0
        %v2166 = vpop.f32.mrb[0].mxu0
        %v2167 = vadd.f32 %v2040, %v2166
        %v2168 = vpop.f32.mrb[0].mxu0
        %2169 = vmatprep.mubr.bf16.mxu0 0
        %2170 = vmatmul.mubr.bf16.gmra.mrb[0].mxu0 %v2019
        %v2171 = vpop.f32.mrb[0].mxu0
        %v2172 = vadd.f32 %v2040, %v2171
        %v2173 = vpop.f32.mrb[0].mxu0
        %v2174 = vpop.f32.mrb[0].mxu0
        %v2175 = vadd.f32 %v2040, %v2174
        %v2176 = vpop.f32.mrb[0].mxu0
        %2177 = vmatprep.mubr.bf16.mxu0 0
        %2178 = vmatmul.mubr.bf16.gmra.mrb[0].mxu0 %v2020
        %v2179 = vpop.f32.mrb[0].mxu0
        %v2180 = vadd.f32 %v2040, %v2179
        %v2181 = vpop.f32.mrb[0].mxu0
        %v2182 = vpop.f32.mrb[0].mxu0
        %v2183 = vadd.f32 %v2040, %v2182
        %v2184 = vpop.f32.mrb[0].mxu0
        %2185 = vdwg.mxu0
        %v2186 = vmax.f32 %v2124, 0.0
        %v2187 = vmax.f32 %v2127, 0.0
        %v2188 = vmax.f32 %v2132, 0.0
        %v2189 = vmax.f32 %v2135, 0.0
        %v2190 = vmax.f32 %v2140, 0.0
        %v2191 = vmax.f32 %v2143, 0.0
        %v2192 = vmax.f32 %v2148, 0.0
        %v2193 = vmax.f32 %v2151, 0.0
        %v2194 = vmax.f32 %v2156, 0.0
        %v2195 = vmax.f32 %v2159, 0.0
        %v2196 = vmax.f32 %v2164, 0.0
        %v2197 = vmax.f32 %v2167, 0.0
        %v2198 = vmax.f32 %v2172, 0.0
        %v2199 = vmax.f32 %v2175, 0.0
        %v2200 = vmax.f32 %v2180, 0.0
        %v2201 = vmax.f32 %v2183, 0.0
        %v2202 = vpack.c.bf16 %v2187, %v2186
        %v2203 = vpack.c.bf16 %v2189, %v2188
        %v2204 = vpack.c.bf16 %v2191, %v2190
        %v2205 = vpack.c.bf16 %v2193, %v2192
        %v2206 = vpack.c.bf16 %v2195, %v2194
        %v2207 = vpack.c.bf16 %v2197, %v2196
        %v2208 = vpack.c.bf16 %v2199, %v2198
        %v2209 = vpack.c.bf16 %v2201, %v2200
        %v2218 = vunpack.c.l.b16 %v2202
        %v2219 = vunpack.c.h.b16 %v2202
        %v2220 = vunpack.c.l.b16 %v2203
        %v2221 = vunpack.c.h.b16 %v2203
        %v2222 = vunpack.c.l.b16 %v2204
        %v2223 = vunpack.c.h.b16 %v2204
        %v2224 = vunpack.c.l.b16 %v2205
        %v2225 = vunpack.c.h.b16 %v2205
        %v2226 = vunpack.c.l.b16 %v2206
        %v2227 = vunpack.c.h.b16 %v2206
        %v2228 = vunpack.c.l.b16 %v2207
        %v2229 = vunpack.c.h.b16 %v2207
        %v2230 = vunpack.c.l.b16 %v2208
        %v2231 = vunpack.c.h.b16 %v2208
        %v2232 = vunpack.c.l.b16 %v2209
        %v2233 = vunpack.c.h.b16 %v2209
        %v2234 = vpack.c.b16 %v2218, %v2218
        %v2235 = vpack.c.b16 %v2219, %v2219
        %v2236 = vpack.c.b16 %v2220, %v2220
        %v2237 = vpack.c.b16 %v2221, %v2221
        %v2238 = vpack.c.b16 %v2222, %v2222
        %v2239 = vpack.c.b16 %v2223, %v2223
        %v2240 = vpack.c.b16 %v2224, %v2224
        %v2241 = vpack.c.b16 %v2225, %v2225
        %v2242 = vpack.c.b16 %v2226, %v2226
        %v2243 = vpack.c.b16 %v2227, %v2227
        %v2244 = vpack.c.b16 %v2228, %v2228
        %v2245 = vpack.c.b16 %v2229, %v2229
        %v2246 = vpack.c.b16 %v2230, %v2230
        %v2247 = vpack.c.b16 %v2231, %v2231
        %v2248 = vpack.c.b16 %v2232, %v2232
        %v2249 = vpack.c.b16 %v2233, %v2233
        %2266 = vst [vmem:[%s361] sm:$0xf] %v2234
        %2267 = vst [vmem:[%s361 + $0x4] sm:$0xf] %v2235
        %2268 = vst [vmem:[%s361 + $0x8] sm:$0xf] %v2236
        %2269 = vst [vmem:[%s361 + $0xc] sm:$0xf] %v2237
        %2270 = vst [vmem:[%s361 + $0x10] sm:$0xf] %v2238
        %2271 = vst [vmem:[%s361 + $0x14] sm:$0xf] %v2239
        %2272 = vst [vmem:[%s361 + $0x18] sm:$0xf] %v2240
        %2273 = vst [vmem:[%s361 + $0x1c] sm:$0xf] %v2241
        %2274 = vst [vmem:[%s361 + $0x20] sm:$0xf] %v2242
        %2275 = vst [vmem:[%s361 + $0x24] sm:$0xf] %v2243
        %2276 = vst [vmem:[%s361 + $0x28] sm:$0xf] %v2244
        %2277 = vst [vmem:[%s361 + $0x2c] sm:$0xf] %v2245
        %2278 = vst [vmem:[%s361 + $0x30] sm:$0xf] %v2246
        %2279 = vst [vmem:[%s361 + $0x34] sm:$0xf] %v2247
        %2280 = vst [vmem:[%s361 + $0x38] sm:$0xf] %v2248
        %2281 = vst [vmem:[%s361 + $0x3c] sm:$0xf] %v2249
        %s2282 = sand.u32 %s210, 1
        %s2283 = scalar_lea.sflag [#allocation4], %s2282
        %s2284 = sand.u32 %s210, 1
        %s2285 = smul.addr %s2284, 64
        %s2286 = scalar_lea.vmem [#allocation8], %s2285
        // Predicated region
        $region65: #{tpu_custom_call.1} parent=51 // pred_check
          %p2287 = pneg %p220
        $region66: #{tpu_custom_call.1} parent=51 // pred_check_branch
          %2289 = sbr.rel (%p2287) target = $region68
        $region67: #{tpu_custom_call.1} parent=51 // pred_region
          %s2290 = smul.u32 8, %s24
          %s2292 = ssub.s32 1024, 1024
          %2293 = vsyncadd %s2283, %s2292
          %s2294 = smul.addr %s2290, 2
          %s2295 = smul.addr %s2294, 64
          %s2296 = scalar_lea.hbm %s8, %s2295
          %s2297 = sshll.u32 %s2286, 4
          %s2298 = int_to_ptr.vmem [resolvable:$true] %s2297
          %2303 = dma.vmem_to_hbm [thread:$0]  %s2298, 1024, %s2296, %s2283, 64, 64, 4
        $region68: #{tpu_custom_call.1} parent=51 // pred_fallthru
          _
      $region52: #{tpu_custom_call.1} parent=5 // pred_fallthru
        _
      %p2304 = scmp.le.s32.totalorder 2, %s19
      // Predicated region
      $region69: #{tpu_custom_call.1} parent=5 // pred_check
        %p2305 = pneg %p2304
      $region70: #{tpu_custom_call.1} parent=5 // pred_check_branch
        %2307 = sbr.rel (%p2305) target = $region72
      $region71: #{tpu_custom_call.1} parent=5 // pred_region
        %s2308 = ssub.s32 %s19, 2
        // Predicated region
        $region73: #{tpu_custom_call.1} parent=71 // pred_check
          %p2309 = pneg %p226
        $region74: #{tpu_custom_call.1} parent=71 // pred_check_branch
          %2311 = sbr.rel (%p2309) target = $region76
        $region75: #{tpu_custom_call.1} parent=71 // pred_region
          %s2312 = sand.u32 %s211, 1
          %s2313 = scalar_lea.sflag [#allocation4], %s2312
          %s2314 = sand.u32 %s211, 1
          %s2315 = smul.addr %s2314, 64
          %s2316 = scalar_lea.vmem [#allocation8], %s2315
          %2317 = dma.done %s2313, 1024
        $region76: #{tpu_custom_call.1} parent=71 // pred_fallthru
          _
      $region72: #{tpu_custom_call.1} parent=5 // pred_fallthru
        _
    $region6: #{tpu_custom_call.1} parent=1 // loop_footer
      %s23 = sadd.s32 1, %s19
    $region7: #{tpu_custom_call.1} parent=1 // loop_footer_branch
      %18 = sbr.rel target = $region3
    $region8: #{tpu_custom_call.1} parent=1 // loop_exit
      _
    %2318 = vsyncpa [#allocation3], 1
    %s2319 = scalar_lea.sflag [#allocation3], 1
    %2320 = vsyncpa %s2319, 1
    %2321 = vsyncpa [#allocation6], 1
    %2322 = vsyncpa [#allocation4], 1
    %s2323 = scalar_lea.sflag [#allocation4], 1
    %2324 = vsyncpa %s2323, 1

</llo_original>
